<compile_context>
chip_gen: v7x
topology: tpu7x:2x2x1
jax: 0.10.0
libtpu: 0.0.40
codegen_flags: <defaults>
</compile_context>

<pallas_src>
import jax
import jax.numpy as jnp
from jax.experimental import pallas as pl
from jax.experimental.pallas import tpu as pltpu

_B_PAD = 8      # pad batch up to a full sublane group
_C_PAD = 128    # pad classifier output to a full lane group (unmasked stores)


# ----------------------------------------------------------------------------
# Fused kernel:
#   1) hoisted input projection (one big matmul, bias folded) -> VMEM scratch `pre`
#   2) LSTM time loop (gate order [i, f, g, o], PyTorch convention), per step only
#      pre[t] + h @ W_hh on the serial path, whole-vreg sigmoid/tanh + lane select
#   3) 2-hidden-layer ReLU MLP + classifier head on the last hidden state
# All operands are tiny and fully VMEM-resident (no grid, whole-array blocks).
# ----------------------------------------------------------------------------
def sst_kernel(x_ref, wih_ref, whh_ref, b_ref,
               w1_ref, b1_ref, w2_ref, b2_ref, wc_ref, bc_ref,
               out_ref, pre_ref):
    TB, _ = x_ref.shape             # x is (T*Bp, D)
    H = whh_ref.shape[0]            # whh is (H, 4H)
    Bp = out_ref.shape[0]
    T = TB // Bp

    # ---- Hoisted input projection + folded bias (off the serial critical path) ----
    pre_ref[...] = (
        jnp.dot(x_ref[...], wih_ref[...], preferred_element_type=jnp.float32)
        + b_ref[...]
    )                               # (T*Bp, 4H)

    whh = whh_ref[...]              # (H, 4H)

    # Lane mask selecting the g-gate lanes [2H, 3H) (tanh) vs sigmoid lanes.
    lane = jax.lax.broadcasted_iota(jnp.int32, (Bp, 4 * H), 1)
    is_g = jnp.logical_and(lane >= 2 * H, lane < 3 * H)

    def step(t, carry):
        h, c = carry
        row = pl.multiple_of(t * Bp, Bp)
        gates = (
            pre_ref[pl.ds(row, Bp), :]
            + jnp.dot(h, whh, preferred_element_type=jnp.float32)
        )                                       # (Bp, 4H)
        sig = jax.nn.sigmoid(gates)             # one EUP pass over the whole vreg
        th = jnp.tanh(gates)                    # one EUP pass over the whole vreg
        act = jnp.where(is_g, th, sig)          # cheap VPU select
        i_g = act[:, 0 * H:1 * H]
        f_g = act[:, 1 * H:2 * H]
        g_g = act[:, 2 * H:3 * H]
        o_g = act[:, 3 * H:4 * H]
        c_new = f_g * c + i_g * g_g
        h_new = o_g * jnp.tanh(c_new)
        return (h_new, c_new)

    h0 = jnp.zeros((Bp, H), jnp.float32)
    c0 = jnp.zeros((Bp, H), jnp.float32)
    h_last, _ = jax.lax.fori_loop(0, T, step, (h0, c0), unroll=min(T, 8))

    # MLP classifier (features = encoder_out[-1]); dropout is identity (inference).
    h = jnp.dot(h_last, w1_ref[...], preferred_element_type=jnp.float32) + b1_ref[...]
    h = jnp.maximum(h, 0.0)
    h = jnp.dot(h, w2_ref[...], preferred_element_type=jnp.float32) + b2_ref[...]
    h = jnp.maximum(h, 0.0)
    logits = jnp.dot(h, wc_ref[...], preferred_element_type=jnp.float32) + bc_ref[...]
    out_ref[...] = logits.astype(out_ref.dtype)   # (Bp, 128) lane-dense slab


# ----------------------------------------------------------------------------
# Wrapper: pre-transpose / pad weights and inputs once at trace time, run the
# single fused pallas_call, slice the padded logits back to (B, num_classes).
# ----------------------------------------------------------------------------
@jax.jit
def sst_net_forward(s, params):
    T, B, D = s.shape
    H4 = params["w_ih"].shape[0]
    H = H4 // 4
    C = params["wc"].shape[0]
    mlp_dim = params["w1"].shape[0]

    # Pre-transpose once (wrapper-side, outside the kernel / time loop).
    wih_t = params["w_ih"].T                     # (D, 4H)
    whh_t = params["w_hh"].T                     # (H, 4H)
    w1_t = params["w1"].T                        # (mlp_input_dim, mlp_dim)
    w2_t = params["w2"].T                        # (mlp_dim, mlp_dim)
    # Lane-dense classifier head: pad num_classes -> 128 so the kernel's output
    # store is an unmasked full-lane vst; slice back below.
    wc_t = jnp.zeros((mlp_dim, _C_PAD), jnp.float32).at[:, :C].set(params["wc"].T)
    bc_p = jnp.zeros((1, _C_PAD), jnp.float32).at[:, :C].set(params["bc"])

    # Pad batch up to a full sublane group; skip the pad copy if already aligned.
    Bp = max(_B_PAD, -(-B // _B_PAD) * _B_PAD)
    if Bp != B:
        s_p = jnp.zeros((T, Bp, D), s.dtype).at[:, :B, :].set(s)
    else:
        s_p = s
    # The kernel only needs x for the hoisted projection -> hand it over as (T*Bp, D).
    x2 = s_p.reshape(T * Bp, D).astype(jnp.float32)

    flops = (
        2 * T * Bp * D * H4                       # hoisted input projection
        + 2 * T * Bp * H * H4                     # recurrent matmuls
        + 2 * Bp * (H * mlp_dim + mlp_dim * mlp_dim + mlp_dim * _C_PAD)  # MLP
    )
    transcendentals = T * Bp * (2 * H4 + H)       # sigmoid + tanh vregs + tanh(c)
    bytes_accessed = 4 * (
        T * Bp * D + D * H4 + H * H4 + H4
        + H * mlp_dim + mlp_dim + mlp_dim * mlp_dim + mlp_dim
        + mlp_dim * _C_PAD + _C_PAD + Bp * _C_PAD
    )

    vmem_spec = pl.BlockSpec(memory_space=pltpu.MemorySpace.VMEM)

    logits_padded = pl.pallas_call(
        sst_kernel,
        out_shape=jax.ShapeDtypeStruct((Bp, _C_PAD), jnp.float32),
        in_specs=[vmem_spec] * 10,
        out_specs=vmem_spec,
        scratch_shapes=[pltpu.VMEM((T * Bp, H4), jnp.float32)],
        cost_estimate=pl.CostEstimate(
            flops=flops, transcendentals=transcendentals,
            bytes_accessed=bytes_accessed),
    )(
        x2, wih_t, whh_t, params["b_lstm"],
        w1_t, params["b1"], w2_t, params["b2"], wc_t, bc_p,
    )
    return logits_padded[:B, :C]


# ----------------------------------------------------------------------------
# Pure-JAX reference (for self-check).
# ----------------------------------------------------------------------------
def reference_forward(s, params):
    T, B, D = s.shape
    H = params["w_hh"].shape[1]

    def step(carry, x_t):
        h, c = carry
        gates = x_t @ params["w_ih"].T + h @ params["w_hh"].T + params["b_lstm"][0]
        i_g = jax.nn.sigmoid(gates[:, 0 * H:1 * H])
        f_g = jax.nn.sigmoid(gates[:, 1 * H:2 * H])
        g_g = jnp.tanh(gates[:, 2 * H:3 * H])
        o_g = jax.nn.sigmoid(gates[:, 3 * H:4 * H])
        c = f_g * c + i_g * g_g
        h = o_g * jnp.tanh(c)
        return (h, c), h

    h0 = jnp.zeros((B, H), jnp.float32)
    (h_last, _), _ = jax.lax.scan(step, (h0, h0), s)
    x = jnp.maximum(h_last @ params["w1"].T + params["b1"][0], 0.0)
    x = jnp.maximum(x @ params["w2"].T + params["b2"][0], 0.0)
    return x @ params["wc"].T + params["bc"][0]


def init_params(key, inp_dim, model_dim, mlp_input_dim, mlp_dim, num_classes):
    ks = jax.random.split(key, 10)
    s_lstm = 1.0 / jnp.sqrt(model_dim)

    def u(k, shape, scale):
        return jax.random.uniform(k, shape, jnp.float32, -scale, scale)

    return {
        # LSTM (single layer, unidirectional); b = b_ih + b_hh folded together.
        "w_ih": u(ks[0], (4 * model_dim, inp_dim), s_lstm),
        "w_hh": u(ks[1], (4 * model_dim, model_dim), s_lstm),
        "b_lstm": u(ks[2], (1, 4 * model_dim), s_lstm),
        # MLP: two hidden layers + classifier head.
        "w1": u(ks[3], (mlp_dim, mlp_input_dim), 1.0 / jnp.sqrt(mlp_input_dim)),
        "b1": u(ks[4], (1, mlp_dim), 1.0 / jnp.sqrt(mlp_input_dim)),
        "w2": u(ks[5], (mlp_dim, mlp_dim), 1.0 / jnp.sqrt(mlp_dim)),
        "b2": u(ks[6], (1, mlp_dim), 1.0 / jnp.sqrt(mlp_dim)),
        "wc": u(ks[7], (num_classes, mlp_dim), 1.0 / jnp.sqrt(mlp_dim)),
        "bc": u(ks[8], (1, num_classes), 1.0 / jnp.sqrt(mlp_dim)),
    }


if __name__ == "__main__":
    # Small shapes consistent with the module's forward:
    seq_len, batch = 8, 2
    inp_dim, model_dim = 16, 32
    mlp_input_dim, mlp_dim, num_classes = model_dim, 32, 4

    key = jax.random.PRNGKey(0)
    k_x, k_p = jax.random.split(key)
    s = jax.random.normal(k_x, (seq_len, batch, inp_dim), jnp.float32)
    params = init_params(k_p, inp_dim, model_dim, mlp_input_dim, mlp_dim, num_classes)

    out = sst_net_forward(s, params)
    out = jax.block_until_ready(out)

    ref = reference_forward(s, params)
    assert out.shape == (batch, num_classes)
    assert jnp.allclose(out, ref, atol=1e-5, rtol=1e-5), "mismatch vs JAX reference"

    print("KERNEL_OK")
</pallas_src>

<mosaic_0001>
module attributes {stable_mosaic.version = 11 : i64} {
  func.func @sst_kernel(%arg0: memref<64x16xf32, #tpu.memory_space<vmem>>, %arg1: memref<16x128xf32, #tpu.memory_space<vmem>>, %arg2: memref<32x128xf32, #tpu.memory_space<vmem>>, %arg3: memref<1x128xf32, #tpu.memory_space<vmem>>, %arg4: memref<32x32xf32, #tpu.memory_space<vmem>>, %arg5: memref<1x32xf32, #tpu.memory_space<vmem>>, %arg6: memref<32x32xf32, #tpu.memory_space<vmem>>, %arg7: memref<1x32xf32, #tpu.memory_space<vmem>>, %arg8: memref<32x128xf32, #tpu.memory_space<vmem>>, %arg9: memref<1x128xf32, #tpu.memory_space<vmem>>, %arg10: memref<8x128xf32, #tpu.memory_space<vmem>>, %arg11: memref<64x128xf32, #tpu.memory_space<vmem>>) attributes {dimension_semantics = [], scalar_prefetch = 0 : i64, scratch_operands = 1 : i64, tpu.core_type = #tpu.core_type<tc>} {
    %c0 = arith.constant 0 : index
    %c0_0 = arith.constant 0 : index
    %0 = vector.load %arg0[%c0, %c0_0] : memref<64x16xf32, #tpu.memory_space<vmem>>, vector<64x16xf32>
    %c0_1 = arith.constant 0 : index
    %c0_2 = arith.constant 0 : index
    %1 = vector.load %arg1[%c0_1, %c0_2] : memref<16x128xf32, #tpu.memory_space<vmem>>, vector<16x128xf32>
    %cst = arith.constant dense<0.000000e+00> : vector<64x128xf32>
    %2 = tpu.matmul %0, %1, %cst {dimension_numbers = #tpu.dot_dimension_numbers<[1], [0], [0], [1], [0, 0, 1, 1], [], []>} : vector<64x16xf32>, vector<16x128xf32>, vector<64x128xf32> -> vector<64x128xf32>
    %c0_3 = arith.constant 0 : index
    %c0_4 = arith.constant 0 : index
    %3 = vector.load %arg3[%c0_3, %c0_4] : memref<1x128xf32, #tpu.memory_space<vmem>>, vector<1x128xf32>
    %4 = vector.broadcast %3 : vector<1x128xf32> to vector<64x128xf32>
    %5 = arith.addf %2, %4 : vector<64x128xf32>
    %c0_5 = arith.constant 0 : index
    %c0_6 = arith.constant 0 : index
    %6 = vector.load %arg11[%c0_5, %c0_6] : memref<64x128xf32, #tpu.memory_space<vmem>>, vector<64x128xf32>
    tpu.vector_store %arg11[%c0_5, %c0_6], %5 {strides = array<i32>} : memref<64x128xf32, #tpu.memory_space<vmem>>, vector<64x128xf32>,
    %c0_7 = arith.constant 0 : index
    %c0_8 = arith.constant 0 : index
    %7 = vector.load %arg2[%c0_7, %c0_8] : memref<32x128xf32, #tpu.memory_space<vmem>>, vector<32x128xf32>
    %8 = tpu.iota {dimensions = array<i32: 1>} : vector<8x128xi32>
    %c64_i32 = arith.constant 64 : i32
    %9 = vector.broadcast %c64_i32 : i32 to vector<8x128xi32>
    %10 = arith.cmpi sge, %8, %9 : vector<8x128xi32>
    %c96_i32 = arith.constant 96 : i32
    %11 = vector.broadcast %c96_i32 : i32 to vector<8x128xi32>
    %12 = arith.cmpi slt, %8, %11 : vector<8x128xi32>
    %13 = arith.andi %10, %12 : vector<8x128xi1>
    %cst_9 = arith.constant 0.000000e+00 : f32
    %14 = vector.broadcast %cst_9 : f32 to vector<8x32xf32>
    %cst_10 = arith.constant 0.000000e+00 : f32
    %15 = vector.broadcast %cst_10 : f32 to vector<8x32xf32>
    %c0_i32 = arith.constant 0 : i32
    %c8_i32 = arith.constant 8 : i32
    %16 = arith.muli %c0_i32, %c8_i32 : i32
    %17 = tpu.assume_multiple %16, 8 : i32
    %18 = arith.index_cast %17 : i32 to index
    %c0_11 = arith.constant 0 : index
    %19 = vector.load %arg11[%18, %c0_11] : memref<64x128xf32, #tpu.memory_space<vmem>>, vector<8x128xf32>
    %cst_12 = arith.constant dense<0.000000e+00> : vector<8x128xf32>
    %20 = tpu.matmul %14, %7, %cst_12 {dimension_numbers = #tpu.dot_dimension_numbers<[1], [0], [0], [1], [0, 0, 1, 1], [], []>} : vector<8x32xf32>, vector<32x128xf32>, vector<8x128xf32> -> vector<8x128xf32>
    %21 = arith.addf %19, %20 : vector<8x128xf32>
    %22 = arith.negf %21 : vector<8x128xf32>
    %23 = math.exp %22 : vector<8x128xf32>
    %cst_13 = arith.constant 1.000000e+00 : f32
    %24 = vector.broadcast %cst_13 : f32 to vector<8x128xf32>
    %25 = arith.addf %24, %23 : vector<8x128xf32>
    %26 = arith.divf %24, %25 : vector<8x128xf32>
    %27 = math.tanh %21 : vector<8x128xf32>
    %28 = arith.select %13, %27, %26 : vector<8x128xi1>, vector<8x128xf32>
    %29 = vector.extract_strided_slice %28 {offsets = [0, 0], sizes = [8, 32], strides = [1, 1]} : vector<8x128xf32> to vector<8x32xf32>
    %30 = vector.extract_strided_slice %28 {offsets = [0, 32], sizes = [8, 32], strides = [1, 1]} : vector<8x128xf32> to vector<8x32xf32>
    %31 = vector.extract_strided_slice %28 {offsets = [0, 64], sizes = [8, 32], strides = [1, 1]} : vector<8x128xf32> to vector<8x32xf32>
    %32 = vector.extract_strided_slice %28 {offsets = [0, 96], sizes = [8, 32], strides = [1, 1]} : vector<8x128xf32> to vector<8x32xf32>
    %33 = arith.mulf %30, %15 : vector<8x32xf32>
    %34 = arith.mulf %29, %31 : vector<8x32xf32>
    %35 = arith.addf %33, %34 : vector<8x32xf32>
    %36 = math.tanh %35 : vector<8x32xf32>
    %37 = arith.mulf %32, %36 : vector<8x32xf32>
    %c1_i32 = arith.constant 1 : i32
    %c8_i32_14 = arith.constant 8 : i32
    %38 = arith.muli %c1_i32, %c8_i32_14 : i32
    %39 = tpu.assume_multiple %38, 8 : i32
    %40 = arith.index_cast %39 : i32 to index
    %c0_15 = arith.constant 0 : index
    %41 = vector.load %arg11[%40, %c0_15] : memref<64x128xf32, #tpu.memory_space<vmem>>, vector<8x128xf32>
    %cst_16 = arith.constant dense<0.000000e+00> : vector<8x128xf32>
    %42 = tpu.matmul %37, %7, %cst_16 {dimension_numbers = #tpu.dot_dimension_numbers<[1], [0], [0], [1], [0, 0, 1, 1], [], []>} : vector<8x32xf32>, vector<32x128xf32>, vector<8x128xf32> -> vector<8x128xf32>
    %43 = arith.addf %41, %42 : vector<8x128xf32>
    %44 = arith.negf %43 : vector<8x128xf32>
    %45 = math.exp %44 : vector<8x128xf32>
    %cst_17 = arith.constant 1.000000e+00 : f32
    %46 = vector.broadcast %cst_17 : f32 to vector<8x128xf32>
    %47 = arith.addf %46, %45 : vector<8x128xf32>
    %48 = arith.divf %46, %47 : vector<8x128xf32>
    %49 = math.tanh %43 : vector<8x128xf32>
    %50 = arith.select %13, %49, %48 : vector<8x128xi1>, vector<8x128xf32>
    %51 = vector.extract_strided_slice %50 {offsets = [0, 0], sizes = [8, 32], strides = [1, 1]} : vector<8x128xf32> to vector<8x32xf32>
    %52 = vector.extract_strided_slice %50 {offsets = [0, 32], sizes = [8, 32], strides = [1, 1]} : vector<8x128xf32> to vector<8x32xf32>
    %53 = vector.extract_strided_slice %50 {offsets = [0, 64], sizes = [8, 32], strides = [1, 1]} : vector<8x128xf32> to vector<8x32xf32>
    %54 = vector.extract_strided_slice %50 {offsets = [0, 96], sizes = [8, 32], strides = [1, 1]} : vector<8x128xf32> to vector<8x32xf32>
    %55 = arith.mulf %52, %35 : vector<8x32xf32>
    %56 = arith.mulf %51, %53 : vector<8x32xf32>
    %57 = arith.addf %55, %56 : vector<8x32xf32>
    %58 = math.tanh %57 : vector<8x32xf32>
    %59 = arith.mulf %54, %58 : vector<8x32xf32>
    %c2_i32 = arith.constant 2 : i32
    %c8_i32_18 = arith.constant 8 : i32
    %60 = arith.muli %c2_i32, %c8_i32_18 : i32
    %61 = tpu.assume_multiple %60, 8 : i32
    %62 = arith.index_cast %61 : i32 to index
    %c0_19 = arith.constant 0 : index
    %63 = vector.load %arg11[%62, %c0_19] : memref<64x128xf32, #tpu.memory_space<vmem>>, vector<8x128xf32>
    %cst_20 = arith.constant dense<0.000000e+00> : vector<8x128xf32>
    %64 = tpu.matmul %59, %7, %cst_20 {dimension_numbers = #tpu.dot_dimension_numbers<[1], [0], [0], [1], [0, 0, 1, 1], [], []>} : vector<8x32xf32>, vector<32x128xf32>, vector<8x128xf32> -> vector<8x128xf32>
    %65 = arith.addf %63, %64 : vector<8x128xf32>
    %66 = arith.negf %65 : vector<8x128xf32>
    %67 = math.exp %66 : vector<8x128xf32>
    %cst_21 = arith.constant 1.000000e+00 : f32
    %68 = vector.broadcast %cst_21 : f32 to vector<8x128xf32>
    %69 = arith.addf %68, %67 : vector<8x128xf32>
    %70 = arith.divf %68, %69 : vector<8x128xf32>
    %71 = math.tanh %65 : vector<8x128xf32>
    %72 = arith.select %13, %71, %70 : vector<8x128xi1>, vector<8x128xf32>
    %73 = vector.extract_strided_slice %72 {offsets = [0, 0], sizes = [8, 32], strides = [1, 1]} : vector<8x128xf32> to vector<8x32xf32>
    %74 = vector.extract_strided_slice %72 {offsets = [0, 32], sizes = [8, 32], strides = [1, 1]} : vector<8x128xf32> to vector<8x32xf32>
    %75 = vector.extract_strided_slice %72 {offsets = [0, 64], sizes = [8, 32], strides = [1, 1]} : vector<8x128xf32> to vector<8x32xf32>
    %76 = vector.extract_strided_slice %72 {offsets = [0, 96], sizes = [8, 32], strides = [1, 1]} : vector<8x128xf32> to vector<8x32xf32>
    %77 = arith.mulf %74, %57 : vector<8x32xf32>
    %78 = arith.mulf %73, %75 : vector<8x32xf32>
    %79 = arith.addf %77, %78 : vector<8x32xf32>
    %80 = math.tanh %79 : vector<8x32xf32>
    %81 = arith.mulf %76, %80 : vector<8x32xf32>
    %c3_i32 = arith.constant 3 : i32
    %c8_i32_22 = arith.constant 8 : i32
    %82 = arith.muli %c3_i32, %c8_i32_22 : i32
    %83 = tpu.assume_multiple %82, 8 : i32
    %84 = arith.index_cast %83 : i32 to index
    %c0_23 = arith.constant 0 : index
    %85 = vector.load %arg11[%84, %c0_23] : memref<64x128xf32, #tpu.memory_space<vmem>>, vector<8x128xf32>
    %cst_24 = arith.constant dense<0.000000e+00> : vector<8x128xf32>
    %86 = tpu.matmul %81, %7, %cst_24 {dimension_numbers = #tpu.dot_dimension_numbers<[1], [0], [0], [1], [0, 0, 1, 1], [], []>} : vector<8x32xf32>, vector<32x128xf32>, vector<8x128xf32> -> vector<8x128xf32>
    %87 = arith.addf %85, %86 : vector<8x128xf32>
    %88 = arith.negf %87 : vector<8x128xf32>
    %89 = math.exp %88 : vector<8x128xf32>
    %cst_25 = arith.constant 1.000000e+00 : f32
    %90 = vector.broadcast %cst_25 : f32 to vector<8x128xf32>
    %91 = arith.addf %90, %89 : vector<8x128xf32>
    %92 = arith.divf %90, %91 : vector<8x128xf32>
    %93 = math.tanh %87 : vector<8x128xf32>
    %94 = arith.select %13, %93, %92 : vector<8x128xi1>, vector<8x128xf32>
    %95 = vector.extract_strided_slice %94 {offsets = [0, 0], sizes = [8, 32], strides = [1, 1]} : vector<8x128xf32> to vector<8x32xf32>
    %96 = vector.extract_strided_slice %94 {offsets = [0, 32], sizes = [8, 32], strides = [1, 1]} : vector<8x128xf32> to vector<8x32xf32>
    %97 = vector.extract_strided_slice %94 {offsets = [0, 64], sizes = [8, 32], strides = [1, 1]} : vector<8x128xf32> to vector<8x32xf32>
    %98 = vector.extract_strided_slice %94 {offsets = [0, 96], sizes = [8, 32], strides = [1, 1]} : vector<8x128xf32> to vector<8x32xf32>
    %99 = arith.mulf %96, %79 : vector<8x32xf32>
    %100 = arith.mulf %95, %97 : vector<8x32xf32>
    %101 = arith.addf %99, %100 : vector<8x32xf32>
    %102 = math.tanh %101 : vector<8x32xf32>
    %103 = arith.mulf %98, %102 : vector<8x32xf32>
    %c4_i32 = arith.constant 4 : i32
    %c8_i32_26 = arith.constant 8 : i32
    %104 = arith.muli %c4_i32, %c8_i32_26 : i32
    %105 = tpu.assume_multiple %104, 8 : i32
    %106 = arith.index_cast %105 : i32 to index
    %c0_27 = arith.constant 0 : index
    %107 = vector.load %arg11[%106, %c0_27] : memref<64x128xf32, #tpu.memory_space<vmem>>, vector<8x128xf32>
    %cst_28 = arith.constant dense<0.000000e+00> : vector<8x128xf32>
    %108 = tpu.matmul %103, %7, %cst_28 {dimension_numbers = #tpu.dot_dimension_numbers<[1], [0], [0], [1], [0, 0, 1, 1], [], []>} : vector<8x32xf32>, vector<32x128xf32>, vector<8x128xf32> -> vector<8x128xf32>
    %109 = arith.addf %107, %108 : vector<8x128xf32>
    %110 = arith.negf %109 : vector<8x128xf32>
    %111 = math.exp %110 : vector<8x128xf32>
    %cst_29 = arith.constant 1.000000e+00 : f32
    %112 = vector.broadcast %cst_29 : f32 to vector<8x128xf32>
    %113 = arith.addf %112, %111 : vector<8x128xf32>
    %114 = arith.divf %112, %113 : vector<8x128xf32>
    %115 = math.tanh %109 : vector<8x128xf32>
    %116 = arith.select %13, %115, %114 : vector<8x128xi1>, vector<8x128xf32>
    %117 = vector.extract_strided_slice %116 {offsets = [0, 0], sizes = [8, 32], strides = [1, 1]} : vector<8x128xf32> to vector<8x32xf32>
    %118 = vector.extract_strided_slice %116 {offsets = [0, 32], sizes = [8, 32], strides = [1, 1]} : vector<8x128xf32> to vector<8x32xf32>
    %119 = vector.extract_strided_slice %116 {offsets = [0, 64], sizes = [8, 32], strides = [1, 1]} : vector<8x128xf32> to vector<8x32xf32>
    %120 = vector.extract_strided_slice %116 {offsets = [0, 96], sizes = [8, 32], strides = [1, 1]} : vector<8x128xf32> to vector<8x32xf32>
    %121 = arith.mulf %118, %101 : vector<8x32xf32>
    %122 = arith.mulf %117, %119 : vector<8x32xf32>
    %123 = arith.addf %121, %122 : vector<8x32xf32>
    %124 = math.tanh %123 : vector<8x32xf32>
    %125 = arith.mulf %120, %124 : vector<8x32xf32>
    %c5_i32 = arith.constant 5 : i32
    %c8_i32_30 = arith.constant 8 : i32
    %126 = arith.muli %c5_i32, %c8_i32_30 : i32
    %127 = tpu.assume_multiple %126, 8 : i32
    %128 = arith.index_cast %127 : i32 to index
    %c0_31 = arith.constant 0 : index
    %129 = vector.load %arg11[%128, %c0_31] : memref<64x128xf32, #tpu.memory_space<vmem>>, vector<8x128xf32>
    %cst_32 = arith.constant dense<0.000000e+00> : vector<8x128xf32>
    %130 = tpu.matmul %125, %7, %cst_32 {dimension_numbers = #tpu.dot_dimension_numbers<[1], [0], [0], [1], [0, 0, 1, 1], [], []>} : vector<8x32xf32>, vector<32x128xf32>, vector<8x128xf32> -> vector<8x128xf32>
    %131 = arith.addf %129, %130 : vector<8x128xf32>
    %132 = arith.negf %131 : vector<8x128xf32>
    %133 = math.exp %132 : vector<8x128xf32>
    %cst_33 = arith.constant 1.000000e+00 : f32
    %134 = vector.broadcast %cst_33 : f32 to vector<8x128xf32>
    %135 = arith.addf %134, %133 : vector<8x128xf32>
    %136 = arith.divf %134, %135 : vector<8x128xf32>
    %137 = math.tanh %131 : vector<8x128xf32>
    %138 = arith.select %13, %137, %136 : vector<8x128xi1>, vector<8x128xf32>
    %139 = vector.extract_strided_slice %138 {offsets = [0, 0], sizes = [8, 32], strides = [1, 1]} : vector<8x128xf32> to vector<8x32xf32>
    %140 = vector.extract_strided_slice %138 {offsets = [0, 32], sizes = [8, 32], strides = [1, 1]} : vector<8x128xf32> to vector<8x32xf32>
    %141 = vector.extract_strided_slice %138 {offsets = [0, 64], sizes = [8, 32], strides = [1, 1]} : vector<8x128xf32> to vector<8x32xf32>
    %142 = vector.extract_strided_slice %138 {offsets = [0, 96], sizes = [8, 32], strides = [1, 1]} : vector<8x128xf32> to vector<8x32xf32>
    %143 = arith.mulf %140, %123 : vector<8x32xf32>
    %144 = arith.mulf %139, %141 : vector<8x32xf32>
    %145 = arith.addf %143, %144 : vector<8x32xf32>
    %146 = math.tanh %145 : vector<8x32xf32>
    %147 = arith.mulf %142, %146 : vector<8x32xf32>
    %c6_i32 = arith.constant 6 : i32
    %c8_i32_34 = arith.constant 8 : i32
    %148 = arith.muli %c6_i32, %c8_i32_34 : i32
    %149 = tpu.assume_multiple %148, 8 : i32
    %150 = arith.index_cast %149 : i32 to index
    %c0_35 = arith.constant 0 : index
    %151 = vector.load %arg11[%150, %c0_35] : memref<64x128xf32, #tpu.memory_space<vmem>>, vector<8x128xf32>
    %cst_36 = arith.constant dense<0.000000e+00> : vector<8x128xf32>
    %152 = tpu.matmul %147, %7, %cst_36 {dimension_numbers = #tpu.dot_dimension_numbers<[1], [0], [0], [1], [0, 0, 1, 1], [], []>} : vector<8x32xf32>, vector<32x128xf32>, vector<8x128xf32> -> vector<8x128xf32>
    %153 = arith.addf %151, %152 : vector<8x128xf32>
    %154 = arith.negf %153 : vector<8x128xf32>
    %155 = math.exp %154 : vector<8x128xf32>
    %cst_37 = arith.constant 1.000000e+00 : f32
    %156 = vector.broadcast %cst_37 : f32 to vector<8x128xf32>
    %157 = arith.addf %156, %155 : vector<8x128xf32>
    %158 = arith.divf %156, %157 : vector<8x128xf32>
    %159 = math.tanh %153 : vector<8x128xf32>
    %160 = arith.select %13, %159, %158 : vector<8x128xi1>, vector<8x128xf32>
    %161 = vector.extract_strided_slice %160 {offsets = [0, 0], sizes = [8, 32], strides = [1, 1]} : vector<8x128xf32> to vector<8x32xf32>
    %162 = vector.extract_strided_slice %160 {offsets = [0, 32], sizes = [8, 32], strides = [1, 1]} : vector<8x128xf32> to vector<8x32xf32>
    %163 = vector.extract_strided_slice %160 {offsets = [0, 64], sizes = [8, 32], strides = [1, 1]} : vector<8x128xf32> to vector<8x32xf32>
    %164 = vector.extract_strided_slice %160 {offsets = [0, 96], sizes = [8, 32], strides = [1, 1]} : vector<8x128xf32> to vector<8x32xf32>
    %165 = arith.mulf %162, %145 : vector<8x32xf32>
    %166 = arith.mulf %161, %163 : vector<8x32xf32>
    %167 = arith.addf %165, %166 : vector<8x32xf32>
    %168 = math.tanh %167 : vector<8x32xf32>
    %169 = arith.mulf %164, %168 : vector<8x32xf32>
    %c7_i32 = arith.constant 7 : i32
    %c8_i32_38 = arith.constant 8 : i32
    %170 = arith.muli %c7_i32, %c8_i32_38 : i32
    %171 = tpu.assume_multiple %170, 8 : i32
    %172 = arith.index_cast %171 : i32 to index
    %c0_39 = arith.constant 0 : index
    %173 = vector.load %arg11[%172, %c0_39] : memref<64x128xf32, #tpu.memory_space<vmem>>, vector<8x128xf32>
    %cst_40 = arith.constant dense<0.000000e+00> : vector<8x128xf32>
    %174 = tpu.matmul %169, %7, %cst_40 {dimension_numbers = #tpu.dot_dimension_numbers<[1], [0], [0], [1], [0, 0, 1, 1], [], []>} : vector<8x32xf32>, vector<32x128xf32>, vector<8x128xf32> -> vector<8x128xf32>
    %175 = arith.addf %173, %174 : vector<8x128xf32>
    %176 = arith.negf %175 : vector<8x128xf32>
    %177 = math.exp %176 : vector<8x128xf32>
    %cst_41 = arith.constant 1.000000e+00 : f32
    %178 = vector.broadcast %cst_41 : f32 to vector<8x128xf32>
    %179 = arith.addf %178, %177 : vector<8x128xf32>
    %180 = arith.divf %178, %179 : vector<8x128xf32>
    %181 = math.tanh %175 : vector<8x128xf32>
    %182 = arith.select %13, %181, %180 : vector<8x128xi1>, vector<8x128xf32>
    %183 = vector.extract_strided_slice %182 {offsets = [0, 0], sizes = [8, 32], strides = [1, 1]} : vector<8x128xf32> to vector<8x32xf32>
    %184 = vector.extract_strided_slice %182 {offsets = [0, 32], sizes = [8, 32], strides = [1, 1]} : vector<8x128xf32> to vector<8x32xf32>
    %185 = vector.extract_strided_slice %182 {offsets = [0, 64], sizes = [8, 32], strides = [1, 1]} : vector<8x128xf32> to vector<8x32xf32>
    %186 = vector.extract_strided_slice %182 {offsets = [0, 96], sizes = [8, 32], strides = [1, 1]} : vector<8x128xf32> to vector<8x32xf32>
    %187 = arith.mulf %184, %167 : vector<8x32xf32>
    %188 = arith.mulf %183, %185 : vector<8x32xf32>
    %189 = arith.addf %187, %188 : vector<8x32xf32>
    %190 = math.tanh %189 : vector<8x32xf32>
    %191 = arith.mulf %186, %190 : vector<8x32xf32>
    %c8_i32_42 = arith.constant 8 : i32
    %c0_43 = arith.constant 0 : index
    %c0_44 = arith.constant 0 : index
    %192 = vector.load %arg4[%c0_43, %c0_44] : memref<32x32xf32, #tpu.memory_space<vmem>>, vector<32x32xf32>
    %cst_45 = arith.constant dense<0.000000e+00> : vector<8x32xf32>
    %193 = tpu.matmul %191, %192, %cst_45 {dimension_numbers = #tpu.dot_dimension_numbers<[1], [0], [0], [1], [0, 0, 1, 1], [], []>} : vector<8x32xf32>, vector<32x32xf32>, vector<8x32xf32> -> vector<8x32xf32>
    %c0_46 = arith.constant 0 : index
    %c0_47 = arith.constant 0 : index
    %194 = vector.load %arg5[%c0_46, %c0_47] : memref<1x32xf32, #tpu.memory_space<vmem>>, vector<1x32xf32>
    %195 = vector.broadcast %194 : vector<1x32xf32> to vector<8x32xf32>
    %196 = arith.addf %193, %195 : vector<8x32xf32>
    %cst_48 = arith.constant 0.000000e+00 : f32
    %197 = vector.broadcast %cst_48 : f32 to vector<8x32xf32>
    %198 = arith.maximumf %196, %197 : vector<8x32xf32>
    %c0_49 = arith.constant 0 : index
    %c0_50 = arith.constant 0 : index
    %199 = vector.load %arg6[%c0_49, %c0_50] : memref<32x32xf32, #tpu.memory_space<vmem>>, vector<32x32xf32>
    %cst_51 = arith.constant dense<0.000000e+00> : vector<8x32xf32>
    %200 = tpu.matmul %198, %199, %cst_51 {dimension_numbers = #tpu.dot_dimension_numbers<[1], [0], [0], [1], [0, 0, 1, 1], [], []>} : vector<8x32xf32>, vector<32x32xf32>, vector<8x32xf32> -> vector<8x32xf32>
    %c0_52 = arith.constant 0 : index
    %c0_53 = arith.constant 0 : index
    %201 = vector.load %arg7[%c0_52, %c0_53] : memref<1x32xf32, #tpu.memory_space<vmem>>, vector<1x32xf32>
    %202 = vector.broadcast %201 : vector<1x32xf32> to vector<8x32xf32>
    %203 = arith.addf %200, %202 : vector<8x32xf32>
    %cst_54 = arith.constant 0.000000e+00 : f32
    %204 = vector.broadcast %cst_54 : f32 to vector<8x32xf32>
    %205 = arith.maximumf %203, %204 : vector<8x32xf32>
    %c0_55 = arith.constant 0 : index
    %c0_56 = arith.constant 0 : index
    %206 = vector.load %arg8[%c0_55, %c0_56] : memref<32x128xf32, #tpu.memory_space<vmem>>, vector<32x128xf32>
    %cst_57 = arith.constant dense<0.000000e+00> : vector<8x128xf32>
    %207 = tpu.matmul %205, %206, %cst_57 {dimension_numbers = #tpu.dot_dimension_numbers<[1], [0], [0], [1], [0, 0, 1, 1], [], []>} : vector<8x32xf32>, vector<32x128xf32>, vector<8x128xf32> -> vector<8x128xf32>
    %c0_58 = arith.constant 0 : index
    %c0_59 = arith.constant 0 : index
    %208 = vector.load %arg9[%c0_58, %c0_59] : memref<1x128xf32, #tpu.memory_space<vmem>>, vector<1x128xf32>
    %209 = vector.broadcast %208 : vector<1x128xf32> to vector<8x128xf32>
    %210 = arith.addf %207, %209 : vector<8x128xf32>
    %c0_60 = arith.constant 0 : index
    %c0_61 = arith.constant 0 : index
    %211 = vector.load %arg10[%c0_60, %c0_61] : memref<8x128xf32, #tpu.memory_space<vmem>>, vector<8x128xf32>
    tpu.vector_store %arg10[%c0_60, %c0_61], %210 {strides = array<i32>} : memref<8x128xf32, #tpu.memory_space<vmem>>, vector<8x128xf32>,
    return
  }
}

</mosaic_0001>

<llo_original>
// kernel: sst_net_forward.1
$region0: #{sst_net_forward.1}
  #allocation0 [shape = 'u32[]', space=smem, size = 0x4, offset = 0x4, fixed_abs, tag = 'smem constant byte address 0x4 - core index']
  #allocation1 [shape = 'u32[144,128]{1,0:T(1,128)}', space=vmem, size = 0x12000, scoped, tag = 'internal scratch']
  #allocation2 [shape = 'f32[64,128]{1,0:T(8,128)}', space=vmem, size = 0x8000, scoped, tag = 'scratch operand']
  %s0 = inlined_call_operand.vmem [shape: f32[64,16], index: 0, kind: input, shape index: {}]
  %s1 = inlined_call_operand.vmem [shape: f32[16,128], index: 1, kind: input, shape index: {}]
  %s2 = inlined_call_operand.vmem [shape: f32[32,128], index: 2, kind: input, shape index: {}]
  %s3 = inlined_call_operand.vmem [shape: f32[1,128], index: 3, kind: input, shape index: {}]
  %s4 = inlined_call_operand.vmem [shape: f32[32,32], index: 4, kind: input, shape index: {}]
  %s5 = inlined_call_operand.vmem [shape: f32[1,32], index: 5, kind: input, shape index: {}]
  %s6 = inlined_call_operand.vmem [shape: f32[32,32], index: 6, kind: input, shape index: {}]
  %s7 = inlined_call_operand.vmem [shape: f32[1,32], index: 7, kind: input, shape index: {}]
  %s8 = inlined_call_operand.vmem [shape: f32[32,128], index: 8, kind: input, shape index: {}]
  %s9 = inlined_call_operand.vmem [shape: f32[1,128], index: 9, kind: input, shape index: {}]
  %s10 = inlined_call_operand.vmem [shape: f32[8,128], index: 10, kind: output, shape index: {}]
  %s11 = sld [smem:[#allocation0]]
  $region50: #{sst_net_forward.1} parent=0
    _
  %s13 = ssub.s32 1, %s11
  %s14 = scalar_select 0, %s13, %s11
  // Predicated region
  $region2: #{sst_net_forward.1} parent=0 // pred_check
    _
  $region3: #{sst_net_forward.1} parent=0 // pred_check_branch
    %16 = sbr.rel (0) target = $region5
  $region4: #{sst_net_forward.1} parent=0 // pred_region
    _
  $region5: #{sst_net_forward.1} parent=0 // pred_fallthru
    _
  // Predicated region
  $region6: #{sst_net_forward.1} parent=0 // pred_check
    _
  $region7: #{sst_net_forward.1} parent=0 // pred_check_branch
    %18 = sbr.rel (0) target = $region9
  $region8: #{sst_net_forward.1} parent=0 // pred_region
    _
  $region9: #{sst_net_forward.1} parent=0 // pred_fallthru
    _
  // Predicated region
  $region10: #{sst_net_forward.1} parent=0 // pred_check
    _
  $region11: #{sst_net_forward.1} parent=0 // pred_check_branch
    %20 = sbr.rel (0) target = $region13
  $region12: #{sst_net_forward.1} parent=0 // pred_region
    _
  $region13: #{sst_net_forward.1} parent=0 // pred_fallthru
    _
  // Predicated region
  $region14: #{sst_net_forward.1} parent=0 // pred_check
    _
  $region15: #{sst_net_forward.1} parent=0 // pred_check_branch
    %22 = sbr.rel (0) target = $region17
  $region16: #{sst_net_forward.1} parent=0 // pred_region
    _
  $region17: #{sst_net_forward.1} parent=0 // pred_fallthru
    _
  // Predicated region
  $region18: #{sst_net_forward.1} parent=0 // pred_check
    _
  $region19: #{sst_net_forward.1} parent=0 // pred_check_branch
    %24 = sbr.rel (0) target = $region21
  $region20: #{sst_net_forward.1} parent=0 // pred_region
    _
  $region21: #{sst_net_forward.1} parent=0 // pred_fallthru
    _
  // Predicated region
  $region22: #{sst_net_forward.1} parent=0 // pred_check
    _
  $region23: #{sst_net_forward.1} parent=0 // pred_check_branch
    %26 = sbr.rel (0) target = $region25
  $region24: #{sst_net_forward.1} parent=0 // pred_region
    _
  $region25: #{sst_net_forward.1} parent=0 // pred_fallthru
    _
  // Predicated region
  $region26: #{sst_net_forward.1} parent=0 // pred_check
    _
  $region27: #{sst_net_forward.1} parent=0 // pred_check_branch
    %28 = sbr.rel (0) target = $region29
  $region28: #{sst_net_forward.1} parent=0 // pred_region
    _
  $region29: #{sst_net_forward.1} parent=0 // pred_fallthru
    _
  // Predicated region
  $region30: #{sst_net_forward.1} parent=0 // pred_check
    _
  $region31: #{sst_net_forward.1} parent=0 // pred_check_branch
    %30 = sbr.rel (0) target = $region33
  $region32: #{sst_net_forward.1} parent=0 // pred_region
    _
  $region33: #{sst_net_forward.1} parent=0 // pred_fallthru
    _
  // Predicated region
  $region34: #{sst_net_forward.1} parent=0 // pred_check
    _
  $region35: #{sst_net_forward.1} parent=0 // pred_check_branch
    %32 = sbr.rel (0) target = $region37
  $region36: #{sst_net_forward.1} parent=0 // pred_region
    _
  $region37: #{sst_net_forward.1} parent=0 // pred_fallthru
    _
  // Predicated region
  $region38: #{sst_net_forward.1} parent=0 // pred_check
    _
  $region39: #{sst_net_forward.1} parent=0 // pred_check_branch
    %34 = sbr.rel (0) target = $region41
  $region40: #{sst_net_forward.1} parent=0 // pred_region
    _
  $region41: #{sst_net_forward.1} parent=0 // pred_fallthru
    _
  %v35 = vld [vmem:[%s0] sm:$0xff]
  %v36 = vld [vmem:[%s0 + $0x8] sm:$0xff]
  %v37 = vld [vmem:[%s0 + $0x10] sm:$0xff]
  %v38 = vld [vmem:[%s0 + $0x18] sm:$0xff]
  %v39 = vld [vmem:[%s0 + $0x20] sm:$0xff]
  %v40 = vld [vmem:[%s0 + $0x28] sm:$0xff]
  %v41 = vld [vmem:[%s0 + $0x30] sm:$0xff]
  %v42 = vld [vmem:[%s0 + $0x38] sm:$0xff]
  %v43 = vld [vmem:[%s1] sm:$0xff]
  %v44 = vld [vmem:[%s1 + $0x8] sm:$0xff]
  %v45 = vld [vmem:[%s3] sm:$0x1]
  %v47 = vlaneseq
  %v48 = vshrl.u32 %v47, 7
  %v49 = vsub.s32 0, %v48
  %v50 = vrot.slane %v45, %v49
  %vm52 = vcmask 130048
  %v54 = vsel %vm52, %v35, 0
  %v57 = vsel %vm52, %v36, 0
  %v60 = vsel %vm52, %v37, 0
  %v63 = vsel %vm52, %v38, 0
  %v66 = vsel %vm52, %v39, 0
  %v69 = vsel %vm52, %v40, 0
  %v72 = vsel %vm52, %v41, 0
  %v75 = vsel %vm52, %v42, 0
  %77 = vmatprep.subr.mxu0 0.0
  %78 = vmatpush1.msra.mxu0 %v43
  %79 = vmatprep.subr.mxu0 0.0
  %80 = vmatpush1.msra.mxu0 %v44
  %81 = vmatprep.subr.mxu0 0.0
  %82 = vmatpush1.msra.mxu0 0.0
  %83 = vmatprep.subr.mxu0 0.0
  %84 = vmatpush1.msra.mxu0 0.0
  %85 = vmatprep.subr.mxu0 0.0
  %86 = vmatpush1.msra.mxu0 0.0
  %87 = vmatprep.subr.mxu0 0.0
  %88 = vmatpush1.msra.mxu0 0.0
  %89 = vmatprep.subr.mxu0 0.0
  %90 = vmatpush1.msra.mxu0 0.0
  %91 = vmatprep.subr.mxu0 0.0
  %92 = vmatpush1.msra.mxu0 0.0
  %93 = vmatprep.subr.mxu0 0.0
  %94 = vmatpush1.msra.mxu0 0.0
  %95 = vmatprep.subr.mxu0 0.0
  %96 = vmatpush1.msra.mxu0 0.0
  %97 = vmatprep.subr.mxu0 0.0
  %98 = vmatpush1.msra.mxu0 0.0
  %99 = vmatprep.subr.mxu0 0.0
  %100 = vmatpush1.msra.mxu0 0.0
  %101 = vmatprep.subr.mxu0 0.0
  %102 = vmatpush1.msra.mxu0 0.0
  %103 = vmatprep.subr.mxu0 0.0
  %104 = vmatpush1.msra.mxu0 0.0
  %105 = vmatprep.subr.mxu0 0.0
  %106 = vmatpush1.msra.mxu0 0.0
  %107 = vmatprep.subr.mxu0 0.0
  %108 = vmatpush1.msra.mxu0 0.0
  %109 = vmatprep.subr.mxu0 0.0
  %110 = vmatpush1.msra.mxu0 0.0
  %111 = vmatprep.subr.mxu0 0.0
  %112 = vmatpush1.msra.mxu0 0.0
  %113 = vmatprep.subr.mxu0 0.0
  %114 = vmatpush1.msra.mxu0 0.0
  %115 = vmatprep.subr.mxu0 0.0
  %116 = vmatpush1.msra.mxu0 0.0
  %117 = vmatprep.subr.mxu0 0.0
  %118 = vmatpush1.msra.mxu0 0.0
  %119 = vmatprep.subr.mxu0 0.0
  %120 = vmatpush1.msra.mxu0 0.0
  %121 = vmatprep.subr.mxu0 0.0
  %122 = vmatpush1.msra.mxu0 0.0
  %123 = vmatprep.subr.mxu0 0.0
  %124 = vmatpush1.msra.mxu0 0.0
  %125 = vmatprep.subr.mxu0 0.0
  %126 = vmatpush1.msra.mxu0 0.0
  %127 = vmatprep.subr.mxu0 0.0
  %128 = vmatpush1.msra.mxu0 0.0
  %129 = vmatprep.subr.mxu0 0.0
  %130 = vmatpush1.msra.mxu0 0.0
  %131 = vmatprep.subr.mxu0 0.0
  %132 = vmatpush1.msra.mxu0 0.0
  %133 = vmatprep.subr.mxu0 0.0
  %134 = vmatpush1.msra.mxu0 0.0
  %135 = vmatprep.subr.mxu0 0.0
  %136 = vmatpush1.msra.mxu0 0.0
  %137 = vmatprep.subr.mxu0 0.0
  %138 = vmatpush1.msra.mxu0 0.0
  %139 = vmatprep.subr.mxu0 0.0
  %140 = vmatpush1.msra.mxu0 0.0
  %141 = vmatprep.mubr.f32.mxu0 0.0
  %142 = vmatmul.mubr.f32.gmra.mrb[0].mxu0 %v54
  %v143 = vpop.f32.mrb[0].mxu0
  %v144 = vadd.f32 %v50, %v143
  %v145 = vpop.f32.mrb[0].mxu0
  %146 = vmatprep.mubr.f32.mxu0 0.0
  %147 = vmatmul.mubr.f32.gmra.mrb[0].mxu0 %v57
  %v148 = vpop.f32.mrb[0].mxu0
  %v149 = vadd.f32 %v50, %v148
  %v150 = vpop.f32.mrb[0].mxu0
  %151 = vmatprep.mubr.f32.mxu0 0.0
  %152 = vmatmul.mubr.f32.gmra.mrb[0].mxu0 %v60
  %v153 = vpop.f32.mrb[0].mxu0
  %v154 = vadd.f32 %v50, %v153
  %v155 = vpop.f32.mrb[0].mxu0
  %156 = vmatprep.mubr.f32.mxu0 0.0
  %157 = vmatmul.mubr.f32.gmra.mrb[0].mxu0 %v63
  %v158 = vpop.f32.mrb[0].mxu0
  %v159 = vadd.f32 %v50, %v158
  %v160 = vpop.f32.mrb[0].mxu0
  %161 = vmatprep.mubr.f32.mxu0 0.0
  %162 = vmatmul.mubr.f32.gmra.mrb[0].mxu0 %v66
  %v163 = vpop.f32.mrb[0].mxu0
  %v164 = vadd.f32 %v50, %v163
  %v165 = vpop.f32.mrb[0].mxu0
  %166 = vmatprep.mubr.f32.mxu0 0.0
  %167 = vmatmul.mubr.f32.gmra.mrb[0].mxu0 %v69
  %v168 = vpop.f32.mrb[0].mxu0
  %v169 = vadd.f32 %v50, %v168
  %v170 = vpop.f32.mrb[0].mxu0
  %171 = vmatprep.mubr.f32.mxu0 0.0
  %172 = vmatmul.mubr.f32.gmra.mrb[0].mxu0 %v72
  %v173 = vpop.f32.mrb[0].mxu0
  %v174 = vadd.f32 %v50, %v173
  %v175 = vpop.f32.mrb[0].mxu0
  %176 = vmatprep.mubr.f32.mxu0 0.0
  %177 = vmatmul.mubr.f32.gmra.mrb[0].mxu0 %v75
  %v178 = vpop.f32.mrb[0].mxu0
  %v179 = vadd.f32 %v50, %v178
  %v180 = vpop.f32.mrb[0].mxu0
  %181 = vdwg.mxu0
  %182 = vst [vmem:[#allocation2] sm:$0xff] %v144
  %183 = vst [vmem:[#allocation2 + $0x8] sm:$0xff] %v149
  %184 = vst [vmem:[#allocation2 + $0x10] sm:$0xff] %v154
  %185 = vst [vmem:[#allocation2 + $0x18] sm:$0xff] %v159
  %186 = vst [vmem:[#allocation2 + $0x20] sm:$0xff] %v164
  %187 = vst [vmem:[#allocation2 + $0x28] sm:$0xff] %v169
  %188 = vst [vmem:[#allocation2 + $0x30] sm:$0xff] %v174
  %189 = vst [vmem:[#allocation2 + $0x38] sm:$0xff] %v179
  %v190 = vld [vmem:[%s2] sm:$0xff]
  %v191 = vld [vmem:[%s2 + $0x8] sm:$0xff]
  %v192 = vld [vmem:[%s2 + $0x10] sm:$0xff]
  %v193 = vld [vmem:[%s2 + $0x18] sm:$0xff]
  %v194 = vlaneseq
  %v195 = vand.u32 %v194, 127
  %vm196 = vcmp.ge.s32.totalorder %v195, 64
  %vm197 = vcmp.lt.s32.totalorder %v195, 96
  %vm198 = vmand %vm196, %vm197
  %v199 = vld [vmem:[#allocation2] sm:$0xff]
  %vm200 = vcmask 261120
  %v202 = vsel %vm200, 0.0, 0
  %204 = vmatprep.subr.mxu0 0.0
  %205 = vmatpush1.msra.mxu0 %v190
  %206 = vmatprep.subr.mxu0 0.0
  %207 = vmatpush1.msra.mxu0 %v191
  %208 = vmatprep.subr.mxu0 0.0
  %209 = vmatpush1.msra.mxu0 %v192
  %210 = vmatprep.subr.mxu0 0.0
  %211 = vmatpush1.msra.mxu0 %v193
  %212 = vmatprep.subr.mxu0 0.0
  %213 = vmatpush1.msra.mxu0 0.0
  %214 = vmatprep.subr.mxu0 0.0
  %215 = vmatpush1.msra.mxu0 0.0
  %216 = vmatprep.subr.mxu0 0.0
  %217 = vmatpush1.msra.mxu0 0.0
  %218 = vmatprep.subr.mxu0 0.0
  %219 = vmatpush1.msra.mxu0 0.0
  %220 = vmatprep.subr.mxu0 0.0
  %221 = vmatpush1.msra.mxu0 0.0
  %222 = vmatprep.subr.mxu0 0.0
  %223 = vmatpush1.msra.mxu0 0.0
  %224 = vmatprep.subr.mxu0 0.0
  %225 = vmatpush1.msra.mxu0 0.0
  %226 = vmatprep.subr.mxu0 0.0
  %227 = vmatpush1.msra.mxu0 0.0
  %228 = vmatprep.subr.mxu0 0.0
  %229 = vmatpush1.msra.mxu0 0.0
  %230 = vmatprep.subr.mxu0 0.0
  %231 = vmatpush1.msra.mxu0 0.0
  %232 = vmatprep.subr.mxu0 0.0
  %233 = vmatpush1.msra.mxu0 0.0
  %234 = vmatprep.subr.mxu0 0.0
  %235 = vmatpush1.msra.mxu0 0.0
  %236 = vmatprep.subr.mxu0 0.0
  %237 = vmatpush1.msra.mxu0 0.0
  %238 = vmatprep.subr.mxu0 0.0
  %239 = vmatpush1.msra.mxu0 0.0
  %240 = vmatprep.subr.mxu0 0.0
  %241 = vmatpush1.msra.mxu0 0.0
  %242 = vmatprep.subr.mxu0 0.0
  %243 = vmatpush1.msra.mxu0 0.0
  %244 = vmatprep.subr.mxu0 0.0
  %245 = vmatpush1.msra.mxu0 0.0
  %246 = vmatprep.subr.mxu0 0.0
  %247 = vmatpush1.msra.mxu0 0.0
  %248 = vmatprep.subr.mxu0 0.0
  %249 = vmatpush1.msra.mxu0 0.0
  %250 = vmatprep.subr.mxu0 0.0
  %251 = vmatpush1.msra.mxu0 0.0
  %252 = vmatprep.subr.mxu0 0.0
  %253 = vmatpush1.msra.mxu0 0.0
  %254 = vmatprep.subr.mxu0 0.0
  %255 = vmatpush1.msra.mxu0 0.0
  %256 = vmatprep.subr.mxu0 0.0
  %257 = vmatpush1.msra.mxu0 0.0
  %258 = vmatprep.subr.mxu0 0.0
  %259 = vmatpush1.msra.mxu0 0.0
  %260 = vmatprep.subr.mxu0 0.0
  %261 = vmatpush1.msra.mxu0 0.0
  %262 = vmatprep.subr.mxu0 0.0
  %263 = vmatpush1.msra.mxu0 0.0
  %264 = vmatprep.subr.mxu0 0.0
  %265 = vmatpush1.msra.mxu0 0.0
  %266 = vmatprep.subr.mxu0 0.0
  %267 = vmatpush1.msra.mxu0 0.0
  %268 = vmatprep.mubr.f32.mxu0 0.0
  %269 = vmatmul.mubr.f32.gmra.mrb[0].mxu0 %v202
  %v270 = vpop.f32.mrb[0].mxu0
  %v271 = vadd.f32 0.0, %v270
  %v272 = vpop.f32.mrb[0].mxu0
  %273 = vdwg.mxu0
  %v274 = vadd.f32 %v199, %v271
  %v275 = vxor.u32 %v274, 2147483648
  %v276 = vmul.f32 %v275, 1.442695
  %v277 = vpow.pop %v276
  %v278 = vadd.f32 %v277, 1.0
  %v279 = vrcp.pop %v278
  %v280 = vmul.f32 1.0, %v279
  %v281 = vtanh.pop %v274
  %v282 = vsel %vm198, %v281, %v280
  %v283 = vmul.f32 %v282, 0.0
  %285 = vrot.lane.b32.xlu0 %v282, 64
  %v286 = vpop.permute.xlu0 %285
  %v288 = vmul.f32 %v282, %v286
  %290 = vrot.lane.b32.xlu0 %v288, 32
  %v291 = vpop.permute.xlu0 %290
  %v293 = vadd.f32 %v283, %v291
  %v294 = vtanh.pop %v293
  %296 = vrot.lane.b32.xlu0 %v294, 64
  %v297 = vpop.permute.xlu0 %296
  %v299 = vmul.f32 %v282, %v297
  %s300 = scalar_lea.vmem [#allocation2], 8
  %v301 = vld [vmem:[%s300] sm:$0xff]
  %303 = vrot.lane.b32.xlu0 %v299, 32
  %v304 = vpop.permute.xlu0 %303
  %v305 = vsel %vm200, %v304, 0
  %307 = vmatprep.subr.mxu0 0.0
  %308 = vmatpush1.msra.mxu0 %v190
  %309 = vmatprep.subr.mxu0 0.0
  %310 = vmatpush1.msra.mxu0 %v191
  %311 = vmatprep.subr.mxu0 0.0
  %312 = vmatpush1.msra.mxu0 %v192
  %313 = vmatprep.subr.mxu0 0.0
  %314 = vmatpush1.msra.mxu0 %v193
  %315 = vmatprep.subr.mxu0 0.0
  %316 = vmatpush1.msra.mxu0 0.0
  %317 = vmatprep.subr.mxu0 0.0
  %318 = vmatpush1.msra.mxu0 0.0
  %319 = vmatprep.subr.mxu0 0.0
  %320 = vmatpush1.msra.mxu0 0.0
  %321 = vmatprep.subr.mxu0 0.0
  %322 = vmatpush1.msra.mxu0 0.0
  %323 = vmatprep.subr.mxu0 0.0
  %324 = vmatpush1.msra.mxu0 0.0
  %325 = vmatprep.subr.mxu0 0.0
  %326 = vmatpush1.msra.mxu0 0.0
  %327 = vmatprep.subr.mxu0 0.0
  %328 = vmatpush1.msra.mxu0 0.0
  %329 = vmatprep.subr.mxu0 0.0
  %330 = vmatpush1.msra.mxu0 0.0
  %331 = vmatprep.subr.mxu0 0.0
  %332 = vmatpush1.msra.mxu0 0.0
  %333 = vmatprep.subr.mxu0 0.0
  %334 = vmatpush1.msra.mxu0 0.0
  %335 = vmatprep.subr.mxu0 0.0
  %336 = vmatpush1.msra.mxu0 0.0
  %337 = vmatprep.subr.mxu0 0.0
  %338 = vmatpush1.msra.mxu0 0.0
  %339 = vmatprep.subr.mxu0 0.0
  %340 = vmatpush1.msra.mxu0 0.0
  %341 = vmatprep.subr.mxu0 0.0
  %342 = vmatpush1.msra.mxu0 0.0
  %343 = vmatprep.subr.mxu0 0.0
  %344 = vmatpush1.msra.mxu0 0.0
  %345 = vmatprep.subr.mxu0 0.0
  %346 = vmatpush1.msra.mxu0 0.0
  %347 = vmatprep.subr.mxu0 0.0
  %348 = vmatpush1.msra.mxu0 0.0
  %349 = vmatprep.subr.mxu0 0.0
  %350 = vmatpush1.msra.mxu0 0.0
  %351 = vmatprep.subr.mxu0 0.0
  %352 = vmatpush1.msra.mxu0 0.0
  %353 = vmatprep.subr.mxu0 0.0
  %354 = vmatpush1.msra.mxu0 0.0
  %355 = vmatprep.subr.mxu0 0.0
  %356 = vmatpush1.msra.mxu0 0.0
  %357 = vmatprep.subr.mxu0 0.0
  %358 = vmatpush1.msra.mxu0 0.0
  %359 = vmatprep.subr.mxu0 0.0
  %360 = vmatpush1.msra.mxu0 0.0
  %361 = vmatprep.subr.mxu0 0.0
  %362 = vmatpush1.msra.mxu0 0.0
  %363 = vmatprep.subr.mxu0 0.0
  %364 = vmatpush1.msra.mxu0 0.0
  %365 = vmatprep.subr.mxu0 0.0
  %366 = vmatpush1.msra.mxu0 0.0
  %367 = vmatprep.subr.mxu0 0.0
  %368 = vmatpush1.msra.mxu0 0.0
  %369 = vmatprep.subr.mxu0 0.0
  %370 = vmatpush1.msra.mxu0 0.0
  %371 = vmatprep.mubr.f32.mxu0 0.0
  %372 = vmatmul.mubr.f32.gmra.mrb[0].mxu0 %v305
  %v373 = vpop.f32.mrb[0].mxu0
  %v374 = vadd.f32 0.0, %v373
  %v375 = vpop.f32.mrb[0].mxu0
  %376 = vdwg.mxu0
  %v377 = vadd.f32 %v301, %v374
  %v378 = vxor.u32 %v377, 2147483648
  %v379 = vmul.f32 %v378, 1.442695
  %v380 = vpow.pop %v379
  %v381 = vadd.f32 %v380, 1.0
  %v382 = vrcp.pop %v381
  %v383 = vmul.f32 1.0, %v382
  %v384 = vtanh.pop %v377
  %v385 = vsel %vm198, %v384, %v383
  %v386 = vmul.f32 %v385, %v293
  %388 = vrot.lane.b32.xlu0 %v385, 64
  %v389 = vpop.permute.xlu0 %388
  %v391 = vmul.f32 %v385, %v389
  %393 = vrot.lane.b32.xlu0 %v391, 32
  %v394 = vpop.permute.xlu0 %393
  %v396 = vadd.f32 %v386, %v394
  %v397 = vtanh.pop %v396
  %399 = vrot.lane.b32.xlu0 %v397, 64
  %v400 = vpop.permute.xlu0 %399
  %v402 = vmul.f32 %v385, %v400
  %s403 = scalar_lea.vmem [#allocation2], 16
  %v404 = vld [vmem:[%s403] sm:$0xff]
  %406 = vrot.lane.b32.xlu0 %v402, 32
  %v407 = vpop.permute.xlu0 %406
  %v408 = vsel %vm200, %v407, 0
  %410 = vmatprep.subr.mxu0 0.0
  %411 = vmatpush1.msra.mxu0 %v190
  %412 = vmatprep.subr.mxu0 0.0
  %413 = vmatpush1.msra.mxu0 %v191
  %414 = vmatprep.subr.mxu0 0.0
  %415 = vmatpush1.msra.mxu0 %v192
  %416 = vmatprep.subr.mxu0 0.0
  %417 = vmatpush1.msra.mxu0 %v193
  %418 = vmatprep.subr.mxu0 0.0
  %419 = vmatpush1.msra.mxu0 0.0
  %420 = vmatprep.subr.mxu0 0.0
  %421 = vmatpush1.msra.mxu0 0.0
  %422 = vmatprep.subr.mxu0 0.0
  %423 = vmatpush1.msra.mxu0 0.0
  %424 = vmatprep.subr.mxu0 0.0
  %425 = vmatpush1.msra.mxu0 0.0
  %426 = vmatprep.subr.mxu0 0.0
  %427 = vmatpush1.msra.mxu0 0.0
  %428 = vmatprep.subr.mxu0 0.0
  %429 = vmatpush1.msra.mxu0 0.0
  %430 = vmatprep.subr.mxu0 0.0
  %431 = vmatpush1.msra.mxu0 0.0
  %432 = vmatprep.subr.mxu0 0.0
  %433 = vmatpush1.msra.mxu0 0.0
  %434 = vmatprep.subr.mxu0 0.0
  %435 = vmatpush1.msra.mxu0 0.0
  %436 = vmatprep.subr.mxu0 0.0
  %437 = vmatpush1.msra.mxu0 0.0
  %438 = vmatprep.subr.mxu0 0.0
  %439 = vmatpush1.msra.mxu0 0.0
  %440 = vmatprep.subr.mxu0 0.0
  %441 = vmatpush1.msra.mxu0 0.0
  %442 = vmatprep.subr.mxu0 0.0
  %443 = vmatpush1.msra.mxu0 0.0
  %444 = vmatprep.subr.mxu0 0.0
  %445 = vmatpush1.msra.mxu0 0.0
  %446 = vmatprep.subr.mxu0 0.0
  %447 = vmatpush1.msra.mxu0 0.0
  %448 = vmatprep.subr.mxu0 0.0
  %449 = vmatpush1.msra.mxu0 0.0
  %450 = vmatprep.subr.mxu0 0.0
  %451 = vmatpush1.msra.mxu0 0.0
  %452 = vmatprep.subr.mxu0 0.0
  %453 = vmatpush1.msra.mxu0 0.0
  %454 = vmatprep.subr.mxu0 0.0
  %455 = vmatpush1.msra.mxu0 0.0
  %456 = vmatprep.subr.mxu0 0.0
  %457 = vmatpush1.msra.mxu0 0.0
  %458 = vmatprep.subr.mxu0 0.0
  %459 = vmatpush1.msra.mxu0 0.0
  %460 = vmatprep.subr.mxu0 0.0
  %461 = vmatpush1.msra.mxu0 0.0
  %462 = vmatprep.subr.mxu0 0.0
  %463 = vmatpush1.msra.mxu0 0.0
  %464 = vmatprep.subr.mxu0 0.0
  %465 = vmatpush1.msra.mxu0 0.0
  %466 = vmatprep.subr.mxu0 0.0
  %467 = vmatpush1.msra.mxu0 0.0
  %468 = vmatprep.subr.mxu0 0.0
  %469 = vmatpush1.msra.mxu0 0.0
  %470 = vmatprep.subr.mxu0 0.0
  %471 = vmatpush1.msra.mxu0 0.0
  %472 = vmatprep.subr.mxu0 0.0
  %473 = vmatpush1.msra.mxu0 0.0
  %474 = vmatprep.mubr.f32.mxu0 0.0
  %475 = vmatmul.mubr.f32.gmra.mrb[0].mxu0 %v408
  %v476 = vpop.f32.mrb[0].mxu0
  %v477 = vadd.f32 0.0, %v476
  %v478 = vpop.f32.mrb[0].mxu0
  %479 = vdwg.mxu0
  %v480 = vadd.f32 %v404, %v477
  %v481 = vxor.u32 %v480, 2147483648
  %v482 = vmul.f32 %v481, 1.442695
  %v483 = vpow.pop %v482
  %v484 = vadd.f32 %v483, 1.0
  %v485 = vrcp.pop %v484
  %v486 = vmul.f32 1.0, %v485
  %v487 = vtanh.pop %v480
  %v488 = vsel %vm198, %v487, %v486
  %v489 = vmul.f32 %v488, %v396
  %491 = vrot.lane.b32.xlu0 %v488, 64
  %v492 = vpop.permute.xlu0 %491
  %v494 = vmul.f32 %v488, %v492
  %496 = vrot.lane.b32.xlu0 %v494, 32
  %v497 = vpop.permute.xlu0 %496
  %v499 = vadd.f32 %v489, %v497
  %v500 = vtanh.pop %v499
  %502 = vrot.lane.b32.xlu0 %v500, 64
  %v503 = vpop.permute.xlu0 %502
  %v505 = vmul.f32 %v488, %v503
  %s506 = scalar_lea.vmem [#allocation2], 24
  %v507 = vld [vmem:[%s506] sm:$0xff]
  %509 = vrot.lane.b32.xlu0 %v505, 32
  %v510 = vpop.permute.xlu0 %509
  %v511 = vsel %vm200, %v510, 0
  %513 = vmatprep.subr.mxu0 0.0
  %514 = vmatpush1.msra.mxu0 %v190
  %515 = vmatprep.subr.mxu0 0.0
  %516 = vmatpush1.msra.mxu0 %v191
  %517 = vmatprep.subr.mxu0 0.0
  %518 = vmatpush1.msra.mxu0 %v192
  %519 = vmatprep.subr.mxu0 0.0
  %520 = vmatpush1.msra.mxu0 %v193
  %521 = vmatprep.subr.mxu0 0.0
  %522 = vmatpush1.msra.mxu0 0.0
  %523 = vmatprep.subr.mxu0 0.0
  %524 = vmatpush1.msra.mxu0 0.0
  %525 = vmatprep.subr.mxu0 0.0
  %526 = vmatpush1.msra.mxu0 0.0
  %527 = vmatprep.subr.mxu0 0.0
  %528 = vmatpush1.msra.mxu0 0.0
  %529 = vmatprep.subr.mxu0 0.0
  %530 = vmatpush1.msra.mxu0 0.0
  %531 = vmatprep.subr.mxu0 0.0
  %532 = vmatpush1.msra.mxu0 0.0
  %533 = vmatprep.subr.mxu0 0.0
  %534 = vmatpush1.msra.mxu0 0.0
  %535 = vmatprep.subr.mxu0 0.0
  %536 = vmatpush1.msra.mxu0 0.0
  %537 = vmatprep.subr.mxu0 0.0
  %538 = vmatpush1.msra.mxu0 0.0
  %539 = vmatprep.subr.mxu0 0.0
  %540 = vmatpush1.msra.mxu0 0.0
  %541 = vmatprep.subr.mxu0 0.0
  %542 = vmatpush1.msra.mxu0 0.0
  %543 = vmatprep.subr.mxu0 0.0
  %544 = vmatpush1.msra.mxu0 0.0
  %545 = vmatprep.subr.mxu0 0.0
  %546 = vmatpush1.msra.mxu0 0.0
  %547 = vmatprep.subr.mxu0 0.0
  %548 = vmatpush1.msra.mxu0 0.0
  %549 = vmatprep.subr.mxu0 0.0
  %550 = vmatpush1.msra.mxu0 0.0
  %551 = vmatprep.subr.mxu0 0.0
  %552 = vmatpush1.msra.mxu0 0.0
  %553 = vmatprep.subr.mxu0 0.0
  %554 = vmatpush1.msra.mxu0 0.0
  %555 = vmatprep.subr.mxu0 0.0
  %556 = vmatpush1.msra.mxu0 0.0
  %557 = vmatprep.subr.mxu0 0.0
  %558 = vmatpush1.msra.mxu0 0.0
  %559 = vmatprep.subr.mxu0 0.0
  %560 = vmatpush1.msra.mxu0 0.0
  %561 = vmatprep.subr.mxu0 0.0
  %562 = vmatpush1.msra.mxu0 0.0
  %563 = vmatprep.subr.mxu0 0.0
  %564 = vmatpush1.msra.mxu0 0.0
  %565 = vmatprep.subr.mxu0 0.0
  %566 = vmatpush1.msra.mxu0 0.0
  %567 = vmatprep.subr.mxu0 0.0
  %568 = vmatpush1.msra.mxu0 0.0
  %569 = vmatprep.subr.mxu0 0.0
  %570 = vmatpush1.msra.mxu0 0.0
  %571 = vmatprep.subr.mxu0 0.0
  %572 = vmatpush1.msra.mxu0 0.0
  %573 = vmatprep.subr.mxu0 0.0
  %574 = vmatpush1.msra.mxu0 0.0
  %575 = vmatprep.subr.mxu0 0.0
  %576 = vmatpush1.msra.mxu0 0.0
  %577 = vmatprep.mubr.f32.mxu0 0.0
  %578 = vmatmul.mubr.f32.gmra.mrb[0].mxu0 %v511
  %v579 = vpop.f32.mrb[0].mxu0
  %v580 = vadd.f32 0.0, %v579
  %v581 = vpop.f32.mrb[0].mxu0
  %582 = vdwg.mxu0
  %v583 = vadd.f32 %v507, %v580
  %v584 = vxor.u32 %v583, 2147483648
  %v585 = vmul.f32 %v584, 1.442695
  %v586 = vpow.pop %v585
  %v587 = vadd.f32 %v586, 1.0
  %v588 = vrcp.pop %v587
  %v589 = vmul.f32 1.0, %v588
  %v590 = vtanh.pop %v583
  %v591 = vsel %vm198, %v590, %v589
  %v592 = vmul.f32 %v591, %v499
  %594 = vrot.lane.b32.xlu0 %v591, 64
  %v595 = vpop.permute.xlu0 %594
  %v597 = vmul.f32 %v591, %v595
  %599 = vrot.lane.b32.xlu0 %v597, 32
  %v600 = vpop.permute.xlu0 %599
  %v602 = vadd.f32 %v592, %v600
  %v603 = vtanh.pop %v602
  %605 = vrot.lane.b32.xlu0 %v603, 64
  %v606 = vpop.permute.xlu0 %605
  %v608 = vmul.f32 %v591, %v606
  %s609 = scalar_lea.vmem [#allocation2], 32
  %v610 = vld [vmem:[%s609] sm:$0xff]
  %612 = vrot.lane.b32.xlu0 %v608, 32
  %v613 = vpop.permute.xlu0 %612
  %v614 = vsel %vm200, %v613, 0
  %616 = vmatprep.subr.mxu0 0.0
  %617 = vmatpush1.msra.mxu0 %v190
  %618 = vmatprep.subr.mxu0 0.0
  %619 = vmatpush1.msra.mxu0 %v191
  %620 = vmatprep.subr.mxu0 0.0
  %621 = vmatpush1.msra.mxu0 %v192
  %622 = vmatprep.subr.mxu0 0.0
  %623 = vmatpush1.msra.mxu0 %v193
  %624 = vmatprep.subr.mxu0 0.0
  %625 = vmatpush1.msra.mxu0 0.0
  %626 = vmatprep.subr.mxu0 0.0
  %627 = vmatpush1.msra.mxu0 0.0
  %628 = vmatprep.subr.mxu0 0.0
  %629 = vmatpush1.msra.mxu0 0.0
  %630 = vmatprep.subr.mxu0 0.0
  %631 = vmatpush1.msra.mxu0 0.0
  %632 = vmatprep.subr.mxu0 0.0
  %633 = vmatpush1.msra.mxu0 0.0
  %634 = vmatprep.subr.mxu0 0.0
  %635 = vmatpush1.msra.mxu0 0.0
  %636 = vmatprep.subr.mxu0 0.0
  %637 = vmatpush1.msra.mxu0 0.0
  %638 = vmatprep.subr.mxu0 0.0
  %639 = vmatpush1.msra.mxu0 0.0
  %640 = vmatprep.subr.mxu0 0.0
  %641 = vmatpush1.msra.mxu0 0.0
  %642 = vmatprep.subr.mxu0 0.0
  %643 = vmatpush1.msra.mxu0 0.0
  %644 = vmatprep.subr.mxu0 0.0
  %645 = vmatpush1.msra.mxu0 0.0
  %646 = vmatprep.subr.mxu0 0.0
  %647 = vmatpush1.msra.mxu0 0.0
  %648 = vmatprep.subr.mxu0 0.0
  %649 = vmatpush1.msra.mxu0 0.0
  %650 = vmatprep.subr.mxu0 0.0
  %651 = vmatpush1.msra.mxu0 0.0
  %652 = vmatprep.subr.mxu0 0.0
  %653 = vmatpush1.msra.mxu0 0.0
  %654 = vmatprep.subr.mxu0 0.0
  %655 = vmatpush1.msra.mxu0 0.0
  %656 = vmatprep.subr.mxu0 0.0
  %657 = vmatpush1.msra.mxu0 0.0
  %658 = vmatprep.subr.mxu0 0.0
  %659 = vmatpush1.msra.mxu0 0.0
  %660 = vmatprep.subr.mxu0 0.0
  %661 = vmatpush1.msra.mxu0 0.0
  %662 = vmatprep.subr.mxu0 0.0
  %663 = vmatpush1.msra.mxu0 0.0
  %664 = vmatprep.subr.mxu0 0.0
  %665 = vmatpush1.msra.mxu0 0.0
  %666 = vmatprep.subr.mxu0 0.0
  %667 = vmatpush1.msra.mxu0 0.0
  %668 = vmatprep.subr.mxu0 0.0
  %669 = vmatpush1.msra.mxu0 0.0
  %670 = vmatprep.subr.mxu0 0.0
  %671 = vmatpush1.msra.mxu0 0.0
  %672 = vmatprep.subr.mxu0 0.0
  %673 = vmatpush1.msra.mxu0 0.0
  %674 = vmatprep.subr.mxu0 0.0
  %675 = vmatpush1.msra.mxu0 0.0
  %676 = vmatprep.subr.mxu0 0.0
  %677 = vmatpush1.msra.mxu0 0.0
  %678 = vmatprep.subr.mxu0 0.0
  %679 = vmatpush1.msra.mxu0 0.0
  %680 = vmatprep.mubr.f32.mxu0 0.0
  %681 = vmatmul.mubr.f32.gmra.mrb[0].mxu0 %v614
  %v682 = vpop.f32.mrb[0].mxu0
  %v683 = vadd.f32 0.0, %v682
  %v684 = vpop.f32.mrb[0].mxu0
  %685 = vdwg.mxu0
  %v686 = vadd.f32 %v610, %v683
  %v687 = vxor.u32 %v686, 2147483648
  %v688 = vmul.f32 %v687, 1.442695
  %v689 = vpow.pop %v688
  %v690 = vadd.f32 %v689, 1.0
  %v691 = vrcp.pop %v690
  %v692 = vmul.f32 1.0, %v691
  %v693 = vtanh.pop %v686
  %v694 = vsel %vm198, %v693, %v692
  %v695 = vmul.f32 %v694, %v602
  %697 = vrot.lane.b32.xlu0 %v694, 64
  %v698 = vpop.permute.xlu0 %697
  %v700 = vmul.f32 %v694, %v698
  %702 = vrot.lane.b32.xlu0 %v700, 32
  %v703 = vpop.permute.xlu0 %702
  %v705 = vadd.f32 %v695, %v703
  %v706 = vtanh.pop %v705
  %708 = vrot.lane.b32.xlu0 %v706, 64
  %v709 = vpop.permute.xlu0 %708
  %v711 = vmul.f32 %v694, %v709
  %s712 = scalar_lea.vmem [#allocation2], 40
  %v713 = vld [vmem:[%s712] sm:$0xff]
  %715 = vrot.lane.b32.xlu0 %v711, 32
  %v716 = vpop.permute.xlu0 %715
  %v717 = vsel %vm200, %v716, 0
  %719 = vmatprep.subr.mxu0 0.0
  %720 = vmatpush1.msra.mxu0 %v190
  %721 = vmatprep.subr.mxu0 0.0
  %722 = vmatpush1.msra.mxu0 %v191
  %723 = vmatprep.subr.mxu0 0.0
  %724 = vmatpush1.msra.mxu0 %v192
  %725 = vmatprep.subr.mxu0 0.0
  %726 = vmatpush1.msra.mxu0 %v193
  %727 = vmatprep.subr.mxu0 0.0
  %728 = vmatpush1.msra.mxu0 0.0
  %729 = vmatprep.subr.mxu0 0.0
  %730 = vmatpush1.msra.mxu0 0.0
  %731 = vmatprep.subr.mxu0 0.0
  %732 = vmatpush1.msra.mxu0 0.0
  %733 = vmatprep.subr.mxu0 0.0
  %734 = vmatpush1.msra.mxu0 0.0
  %735 = vmatprep.subr.mxu0 0.0
  %736 = vmatpush1.msra.mxu0 0.0
  %737 = vmatprep.subr.mxu0 0.0
  %738 = vmatpush1.msra.mxu0 0.0
  %739 = vmatprep.subr.mxu0 0.0
  %740 = vmatpush1.msra.mxu0 0.0
  %741 = vmatprep.subr.mxu0 0.0
  %742 = vmatpush1.msra.mxu0 0.0
  %743 = vmatprep.subr.mxu0 0.0
  %744 = vmatpush1.msra.mxu0 0.0
  %745 = vmatprep.subr.mxu0 0.0
  %746 = vmatpush1.msra.mxu0 0.0
  %747 = vmatprep.subr.mxu0 0.0
  %748 = vmatpush1.msra.mxu0 0.0
  %749 = vmatprep.subr.mxu0 0.0
  %750 = vmatpush1.msra.mxu0 0.0
  %751 = vmatprep.subr.mxu0 0.0
  %752 = vmatpush1.msra.mxu0 0.0
  %753 = vmatprep.subr.mxu0 0.0
  %754 = vmatpush1.msra.mxu0 0.0
  %755 = vmatprep.subr.mxu0 0.0
  %756 = vmatpush1.msra.mxu0 0.0
  %757 = vmatprep.subr.mxu0 0.0
  %758 = vmatpush1.msra.mxu0 0.0
  %759 = vmatprep.subr.mxu0 0.0
  %760 = vmatpush1.msra.mxu0 0.0
  %761 = vmatprep.subr.mxu0 0.0
  %762 = vmatpush1.msra.mxu0 0.0
  %763 = vmatprep.subr.mxu0 0.0
  %764 = vmatpush1.msra.mxu0 0.0
  %765 = vmatprep.subr.mxu0 0.0
  %766 = vmatpush1.msra.mxu0 0.0
  %767 = vmatprep.subr.mxu0 0.0
  %768 = vmatpush1.msra.mxu0 0.0
  %769 = vmatprep.subr.mxu0 0.0
  %770 = vmatpush1.msra.mxu0 0.0
  %771 = vmatprep.subr.mxu0 0.0
  %772 = vmatpush1.msra.mxu0 0.0
  %773 = vmatprep.subr.mxu0 0.0
  %774 = vmatpush1.msra.mxu0 0.0
  %775 = vmatprep.subr.mxu0 0.0
  %776 = vmatpush1.msra.mxu0 0.0
  %777 = vmatprep.subr.mxu0 0.0
  %778 = vmatpush1.msra.mxu0 0.0
  %779 = vmatprep.subr.mxu0 0.0
  %780 = vmatpush1.msra.mxu0 0.0
  %781 = vmatprep.subr.mxu0 0.0
  %782 = vmatpush1.msra.mxu0 0.0
  %783 = vmatprep.mubr.f32.mxu0 0.0
  %784 = vmatmul.mubr.f32.gmra.mrb[0].mxu0 %v717
  %v785 = vpop.f32.mrb[0].mxu0
  %v786 = vadd.f32 0.0, %v785
  %v787 = vpop.f32.mrb[0].mxu0
  %788 = vdwg.mxu0
  %v789 = vadd.f32 %v713, %v786
  %v790 = vxor.u32 %v789, 2147483648
  %v791 = vmul.f32 %v790, 1.442695
  %v792 = vpow.pop %v791
  %v793 = vadd.f32 %v792, 1.0
  %v794 = vrcp.pop %v793
  %v795 = vmul.f32 1.0, %v794
  %v796 = vtanh.pop %v789
  %v797 = vsel %vm198, %v796, %v795
  %v798 = vmul.f32 %v797, %v705
  %800 = vrot.lane.b32.xlu0 %v797, 64
  %v801 = vpop.permute.xlu0 %800
  %v803 = vmul.f32 %v797, %v801
  %805 = vrot.lane.b32.xlu0 %v803, 32
  %v806 = vpop.permute.xlu0 %805
  %v808 = vadd.f32 %v798, %v806
  %v809 = vtanh.pop %v808
  %811 = vrot.lane.b32.xlu0 %v809, 64
  %v812 = vpop.permute.xlu0 %811
  %v814 = vmul.f32 %v797, %v812
  %s815 = scalar_lea.vmem [#allocation2], 48
  %v816 = vld [vmem:[%s815] sm:$0xff]
  %818 = vrot.lane.b32.xlu0 %v814, 32
  %v819 = vpop.permute.xlu0 %818
  %v820 = vsel %vm200, %v819, 0
  %822 = vmatprep.subr.mxu0 0.0
  %823 = vmatpush1.msra.mxu0 %v190
  %824 = vmatprep.subr.mxu0 0.0
  %825 = vmatpush1.msra.mxu0 %v191
  %826 = vmatprep.subr.mxu0 0.0
  %827 = vmatpush1.msra.mxu0 %v192
  %828 = vmatprep.subr.mxu0 0.0
  %829 = vmatpush1.msra.mxu0 %v193
  %830 = vmatprep.subr.mxu0 0.0
  %831 = vmatpush1.msra.mxu0 0.0
  %832 = vmatprep.subr.mxu0 0.0
  %833 = vmatpush1.msra.mxu0 0.0
  %834 = vmatprep.subr.mxu0 0.0
  %835 = vmatpush1.msra.mxu0 0.0
  %836 = vmatprep.subr.mxu0 0.0
  %837 = vmatpush1.msra.mxu0 0.0
  %838 = vmatprep.subr.mxu0 0.0
  %839 = vmatpush1.msra.mxu0 0.0
  %840 = vmatprep.subr.mxu0 0.0
  %841 = vmatpush1.msra.mxu0 0.0
  %842 = vmatprep.subr.mxu0 0.0
  %843 = vmatpush1.msra.mxu0 0.0
  %844 = vmatprep.subr.mxu0 0.0
  %845 = vmatpush1.msra.mxu0 0.0
  %846 = vmatprep.subr.mxu0 0.0
  %847 = vmatpush1.msra.mxu0 0.0
  %848 = vmatprep.subr.mxu0 0.0
  %849 = vmatpush1.msra.mxu0 0.0
  %850 = vmatprep.subr.mxu0 0.0
  %851 = vmatpush1.msra.mxu0 0.0
  %852 = vmatprep.subr.mxu0 0.0
  %853 = vmatpush1.msra.mxu0 0.0
  %854 = vmatprep.subr.mxu0 0.0
  %855 = vmatpush1.msra.mxu0 0.0
  %856 = vmatprep.subr.mxu0 0.0
  %857 = vmatpush1.msra.mxu0 0.0
  %858 = vmatprep.subr.mxu0 0.0
  %859 = vmatpush1.msra.mxu0 0.0
  %860 = vmatprep.subr.mxu0 0.0
  %861 = vmatpush1.msra.mxu0 0.0
  %862 = vmatprep.subr.mxu0 0.0
  %863 = vmatpush1.msra.mxu0 0.0
  %864 = vmatprep.subr.mxu0 0.0
  %865 = vmatpush1.msra.mxu0 0.0
  %866 = vmatprep.subr.mxu0 0.0
  %867 = vmatpush1.msra.mxu0 0.0
  %868 = vmatprep.subr.mxu0 0.0
  %869 = vmatpush1.msra.mxu0 0.0
  %870 = vmatprep.subr.mxu0 0.0
  %871 = vmatpush1.msra.mxu0 0.0
  %872 = vmatprep.subr.mxu0 0.0
  %873 = vmatpush1.msra.mxu0 0.0
  %874 = vmatprep.subr.mxu0 0.0
  %875 = vmatpush1.msra.mxu0 0.0
  %876 = vmatprep.subr.mxu0 0.0
  %877 = vmatpush1.msra.mxu0 0.0
  %878 = vmatprep.subr.mxu0 0.0
  %879 = vmatpush1.msra.mxu0 0.0
  %880 = vmatprep.subr.mxu0 0.0
  %881 = vmatpush1.msra.mxu0 0.0
  %882 = vmatprep.subr.mxu0 0.0
  %883 = vmatpush1.msra.mxu0 0.0
  %884 = vmatprep.subr.mxu0 0.0
  %885 = vmatpush1.msra.mxu0 0.0
  %886 = vmatprep.mubr.f32.mxu0 0.0
  %887 = vmatmul.mubr.f32.gmra.mrb[0].mxu0 %v820
  %v888 = vpop.f32.mrb[0].mxu0
  %v889 = vadd.f32 0.0, %v888
  %v890 = vpop.f32.mrb[0].mxu0
  %891 = vdwg.mxu0
  %v892 = vadd.f32 %v816, %v889
  %v893 = vxor.u32 %v892, 2147483648
  %v894 = vmul.f32 %v893, 1.442695
  %v895 = vpow.pop %v894
  %v896 = vadd.f32 %v895, 1.0
  %v897 = vrcp.pop %v896
  %v898 = vmul.f32 1.0, %v897
  %v899 = vtanh.pop %v892
  %v900 = vsel %vm198, %v899, %v898
  %v901 = vmul.f32 %v900, %v808
  %903 = vrot.lane.b32.xlu0 %v900, 64
  %v904 = vpop.permute.xlu0 %903
  %v906 = vmul.f32 %v900, %v904
  %908 = vrot.lane.b32.xlu0 %v906, 32
  %v909 = vpop.permute.xlu0 %908
  %v911 = vadd.f32 %v901, %v909
  %v912 = vtanh.pop %v911
  %914 = vrot.lane.b32.xlu0 %v912, 64
  %v915 = vpop.permute.xlu0 %914
  %v917 = vmul.f32 %v900, %v915
  %s918 = scalar_lea.vmem [#allocation2], 56
  %v919 = vld [vmem:[%s918] sm:$0xff]
  %921 = vrot.lane.b32.xlu0 %v917, 32
  %v922 = vpop.permute.xlu0 %921
  %v923 = vsel %vm200, %v922, 0
  %925 = vmatprep.subr.mxu0 0.0
  %926 = vmatpush1.msra.mxu0 %v190
  %927 = vmatprep.subr.mxu0 0.0
  %928 = vmatpush1.msra.mxu0 %v191
  %929 = vmatprep.subr.mxu0 0.0
  %930 = vmatpush1.msra.mxu0 %v192
  %931 = vmatprep.subr.mxu0 0.0
  %932 = vmatpush1.msra.mxu0 %v193
  %933 = vmatprep.subr.mxu0 0.0
  %934 = vmatpush1.msra.mxu0 0.0
  %935 = vmatprep.subr.mxu0 0.0
  %936 = vmatpush1.msra.mxu0 0.0
  %937 = vmatprep.subr.mxu0 0.0
  %938 = vmatpush1.msra.mxu0 0.0
  %939 = vmatprep.subr.mxu0 0.0
  %940 = vmatpush1.msra.mxu0 0.0
  %941 = vmatprep.subr.mxu0 0.0
  %942 = vmatpush1.msra.mxu0 0.0
  %943 = vmatprep.subr.mxu0 0.0
  %944 = vmatpush1.msra.mxu0 0.0
  %945 = vmatprep.subr.mxu0 0.0
  %946 = vmatpush1.msra.mxu0 0.0
  %947 = vmatprep.subr.mxu0 0.0
  %948 = vmatpush1.msra.mxu0 0.0
  %949 = vmatprep.subr.mxu0 0.0
  %950 = vmatpush1.msra.mxu0 0.0
  %951 = vmatprep.subr.mxu0 0.0
  %952 = vmatpush1.msra.mxu0 0.0
  %953 = vmatprep.subr.mxu0 0.0
  %954 = vmatpush1.msra.mxu0 0.0
  %955 = vmatprep.subr.mxu0 0.0
  %956 = vmatpush1.msra.mxu0 0.0
  %957 = vmatprep.subr.mxu0 0.0
  %958 = vmatpush1.msra.mxu0 0.0
  %959 = vmatprep.subr.mxu0 0.0
  %960 = vmatpush1.msra.mxu0 0.0
  %961 = vmatprep.subr.mxu0 0.0
  %962 = vmatpush1.msra.mxu0 0.0
  %963 = vmatprep.subr.mxu0 0.0
  %964 = vmatpush1.msra.mxu0 0.0
  %965 = vmatprep.subr.mxu0 0.0
  %966 = vmatpush1.msra.mxu0 0.0
  %967 = vmatprep.subr.mxu0 0.0
  %968 = vmatpush1.msra.mxu0 0.0
  %969 = vmatprep.subr.mxu0 0.0
  %970 = vmatpush1.msra.mxu0 0.0
  %971 = vmatprep.subr.mxu0 0.0
  %972 = vmatpush1.msra.mxu0 0.0
  %973 = vmatprep.subr.mxu0 0.0
  %974 = vmatpush1.msra.mxu0 0.0
  %975 = vmatprep.subr.mxu0 0.0
  %976 = vmatpush1.msra.mxu0 0.0
  %977 = vmatprep.subr.mxu0 0.0
  %978 = vmatpush1.msra.mxu0 0.0
  %979 = vmatprep.subr.mxu0 0.0
  %980 = vmatpush1.msra.mxu0 0.0
  %981 = vmatprep.subr.mxu0 0.0
  %982 = vmatpush1.msra.mxu0 0.0
  %983 = vmatprep.subr.mxu0 0.0
  %984 = vmatpush1.msra.mxu0 0.0
  %985 = vmatprep.subr.mxu0 0.0
  %986 = vmatpush1.msra.mxu0 0.0
  %987 = vmatprep.subr.mxu0 0.0
  %988 = vmatpush1.msra.mxu0 0.0
  %989 = vmatprep.mubr.f32.mxu0 0.0
  %990 = vmatmul.mubr.f32.gmra.mrb[0].mxu0 %v923
  %v991 = vpop.f32.mrb[0].mxu0
  %v992 = vadd.f32 0.0, %v991
  %v993 = vpop.f32.mrb[0].mxu0
  %994 = vdwg.mxu0
  %v995 = vadd.f32 %v919, %v992
  %v996 = vxor.u32 %v995, 2147483648
  %v997 = vmul.f32 %v996, 1.442695
  %v998 = vpow.pop %v997
  %v999 = vadd.f32 %v998, 1.0
  %v1000 = vrcp.pop %v999
  %v1001 = vmul.f32 1.0, %v1000
  %v1002 = vtanh.pop %v995
  %v1003 = vsel %vm198, %v1002, %v1001
  %v1004 = vmul.f32 %v1003, %v911
  %1006 = vrot.lane.b32.xlu0 %v1003, 64
  %v1007 = vpop.permute.xlu0 %1006
  %v1009 = vmul.f32 %v1003, %v1007
  %1011 = vrot.lane.b32.xlu0 %v1009, 32
  %v1012 = vpop.permute.xlu0 %1011
  %v1014 = vadd.f32 %v1004, %v1012
  %v1015 = vtanh.pop %v1014
  %1017 = vrot.lane.b32.xlu0 %v1015, 64
  %v1018 = vpop.permute.xlu0 %1017
  %v1020 = vmul.f32 %v1003, %v1018
  %v1021 = vld [vmem:[%s4] sm:$0xff]
  %v1022 = vld [vmem:[%s4 + $0x8] sm:$0xff]
  %v1023 = vld [vmem:[%s4 + $0x10] sm:$0xff]
  %v1024 = vld [vmem:[%s4 + $0x18] sm:$0xff]
  %v1025 = vld [vmem:[%s5] sm:$0x1]
  %v1027 = vlaneseq
  %v1028 = vshrl.u32 %v1027, 7
  %v1029 = vsub.s32 0, %v1028
  %v1030 = vrot.slane %v1025, %v1029
  %1033 = vrot.lane.b32.xlu0 %v1020, 32
  %v1034 = vpop.permute.xlu0 %1033
  %v1035 = vsel %vm200, %v1034, 0
  %1037 = vmatprep.subr.mxu0 0.0
  %1038 = vmatpush1.msra.mxu0 %v1021
  %1039 = vmatprep.subr.mxu0 0.0
  %1040 = vmatpush1.msra.mxu0 %v1022
  %1041 = vmatprep.subr.mxu0 0.0
  %1042 = vmatpush1.msra.mxu0 %v1023
  %1043 = vmatprep.subr.mxu0 0.0
  %1044 = vmatpush1.msra.mxu0 %v1024
  %1045 = vmatprep.subr.mxu0 0.0
  %1046 = vmatpush1.msra.mxu0 0.0
  %1047 = vmatprep.subr.mxu0 0.0
  %1048 = vmatpush1.msra.mxu0 0.0
  %1049 = vmatprep.subr.mxu0 0.0
  %1050 = vmatpush1.msra.mxu0 0.0
  %1051 = vmatprep.subr.mxu0 0.0
  %1052 = vmatpush1.msra.mxu0 0.0
  %1053 = vmatprep.subr.mxu0 0.0
  %1054 = vmatpush1.msra.mxu0 0.0
  %1055 = vmatprep.subr.mxu0 0.0
  %1056 = vmatpush1.msra.mxu0 0.0
  %1057 = vmatprep.subr.mxu0 0.0
  %1058 = vmatpush1.msra.mxu0 0.0
  %1059 = vmatprep.subr.mxu0 0.0
  %1060 = vmatpush1.msra.mxu0 0.0
  %1061 = vmatprep.subr.mxu0 0.0
  %1062 = vmatpush1.msra.mxu0 0.0
  %1063 = vmatprep.subr.mxu0 0.0
  %1064 = vmatpush1.msra.mxu0 0.0
  %1065 = vmatprep.subr.mxu0 0.0
  %1066 = vmatpush1.msra.mxu0 0.0
  %1067 = vmatprep.subr.mxu0 0.0
  %1068 = vmatpush1.msra.mxu0 0.0
  %1069 = vmatprep.subr.mxu0 0.0
  %1070 = vmatpush1.msra.mxu0 0.0
  %1071 = vmatprep.subr.mxu0 0.0
  %1072 = vmatpush1.msra.mxu0 0.0
  %1073 = vmatprep.subr.mxu0 0.0
  %1074 = vmatpush1.msra.mxu0 0.0
  %1075 = vmatprep.subr.mxu0 0.0
  %1076 = vmatpush1.msra.mxu0 0.0
  %1077 = vmatprep.subr.mxu0 0.0
  %1078 = vmatpush1.msra.mxu0 0.0
  %1079 = vmatprep.subr.mxu0 0.0
  %1080 = vmatpush1.msra.mxu0 0.0
  %1081 = vmatprep.subr.mxu0 0.0
  %1082 = vmatpush1.msra.mxu0 0.0
  %1083 = vmatprep.subr.mxu0 0.0
  %1084 = vmatpush1.msra.mxu0 0.0
  %1085 = vmatprep.subr.mxu0 0.0
  %1086 = vmatpush1.msra.mxu0 0.0
  %1087 = vmatprep.subr.mxu0 0.0
  %1088 = vmatpush1.msra.mxu0 0.0
  %1089 = vmatprep.subr.mxu0 0.0
  %1090 = vmatpush1.msra.mxu0 0.0
  %1091 = vmatprep.subr.mxu0 0.0
  %1092 = vmatpush1.msra.mxu0 0.0
  %1093 = vmatprep.subr.mxu0 0.0
  %1094 = vmatpush1.msra.mxu0 0.0
  %1095 = vmatprep.subr.mxu0 0.0
  %1096 = vmatpush1.msra.mxu0 0.0
  %1097 = vmatprep.subr.mxu0 0.0
  %1098 = vmatpush1.msra.mxu0 0.0
  %1099 = vmatprep.subr.mxu0 0.0
  %1100 = vmatpush1.msra.mxu0 0.0
  %1101 = vmatprep.mubr.f32.mxu0 0.0
  %1102 = vmatmul.mubr.f32.gmra.mrb[0].mxu0 %v1035
  %v1103 = vpop.f32.mrb[0].mxu0
  %v1104 = vadd.f32 %v1030, %v1103
  %v1105 = vpop.f32.mrb[0].mxu0
  %1106 = vdwg.mxu0
  %v1107 = vmax.f32 %v1104, 0.0
  %v1108 = vld [vmem:[%s6] sm:$0xff]
  %v1109 = vld [vmem:[%s6 + $0x8] sm:$0xff]
  %v1110 = vld [vmem:[%s6 + $0x10] sm:$0xff]
  %v1111 = vld [vmem:[%s6 + $0x18] sm:$0xff]
  %v1112 = vld [vmem:[%s7] sm:$0x1]
  %v1114 = vlaneseq
  %v1115 = vshrl.u32 %v1114, 7
  %v1116 = vsub.s32 0, %v1115
  %v1117 = vrot.slane %v1112, %v1116
  %v1120 = vsel %vm200, %v1107, 0
  %1122 = vmatprep.subr.mxu0 0.0
  %1123 = vmatpush1.msra.mxu0 %v1108
  %1124 = vmatprep.subr.mxu0 0.0
  %1125 = vmatpush1.msra.mxu0 %v1109
  %1126 = vmatprep.subr.mxu0 0.0
  %1127 = vmatpush1.msra.mxu0 %v1110
  %1128 = vmatprep.subr.mxu0 0.0
  %1129 = vmatpush1.msra.mxu0 %v1111
  %1130 = vmatprep.subr.mxu0 0.0
  %1131 = vmatpush1.msra.mxu0 0.0
  %1132 = vmatprep.subr.mxu0 0.0
  %1133 = vmatpush1.msra.mxu0 0.0
  %1134 = vmatprep.subr.mxu0 0.0
  %1135 = vmatpush1.msra.mxu0 0.0
  %1136 = vmatprep.subr.mxu0 0.0
  %1137 = vmatpush1.msra.mxu0 0.0
  %1138 = vmatprep.subr.mxu0 0.0
  %1139 = vmatpush1.msra.mxu0 0.0
  %1140 = vmatprep.subr.mxu0 0.0
  %1141 = vmatpush1.msra.mxu0 0.0
  %1142 = vmatprep.subr.mxu0 0.0
  %1143 = vmatpush1.msra.mxu0 0.0
  %1144 = vmatprep.subr.mxu0 0.0
  %1145 = vmatpush1.msra.mxu0 0.0
  %1146 = vmatprep.subr.mxu0 0.0
  %1147 = vmatpush1.msra.mxu0 0.0
  %1148 = vmatprep.subr.mxu0 0.0
  %1149 = vmatpush1.msra.mxu0 0.0
  %1150 = vmatprep.subr.mxu0 0.0
  %1151 = vmatpush1.msra.mxu0 0.0
  %1152 = vmatprep.subr.mxu0 0.0
  %1153 = vmatpush1.msra.mxu0 0.0
  %1154 = vmatprep.subr.mxu0 0.0
  %1155 = vmatpush1.msra.mxu0 0.0
  %1156 = vmatprep.subr.mxu0 0.0
  %1157 = vmatpush1.msra.mxu0 0.0
  %1158 = vmatprep.subr.mxu0 0.0
  %1159 = vmatpush1.msra.mxu0 0.0
  %1160 = vmatprep.subr.mxu0 0.0
  %1161 = vmatpush1.msra.mxu0 0.0
  %1162 = vmatprep.subr.mxu0 0.0
  %1163 = vmatpush1.msra.mxu0 0.0
  %1164 = vmatprep.subr.mxu0 0.0
  %1165 = vmatpush1.msra.mxu0 0.0
  %1166 = vmatprep.subr.mxu0 0.0
  %1167 = vmatpush1.msra.mxu0 0.0
  %1168 = vmatprep.subr.mxu0 0.0
  %1169 = vmatpush1.msra.mxu0 0.0
  %1170 = vmatprep.subr.mxu0 0.0
  %1171 = vmatpush1.msra.mxu0 0.0
  %1172 = vmatprep.subr.mxu0 0.0
  %1173 = vmatpush1.msra.mxu0 0.0
  %1174 = vmatprep.subr.mxu0 0.0
  %1175 = vmatpush1.msra.mxu0 0.0
  %1176 = vmatprep.subr.mxu0 0.0
  %1177 = vmatpush1.msra.mxu0 0.0
  %1178 = vmatprep.subr.mxu0 0.0
  %1179 = vmatpush1.msra.mxu0 0.0
  %1180 = vmatprep.subr.mxu0 0.0
  %1181 = vmatpush1.msra.mxu0 0.0
  %1182 = vmatprep.subr.mxu0 0.0
  %1183 = vmatpush1.msra.mxu0 0.0
  %1184 = vmatprep.subr.mxu0 0.0
  %1185 = vmatpush1.msra.mxu0 0.0
  %1186 = vmatprep.mubr.f32.mxu0 0.0
  %1187 = vmatmul.mubr.f32.gmra.mrb[0].mxu0 %v1120
  %v1188 = vpop.f32.mrb[0].mxu0
  %v1189 = vadd.f32 %v1117, %v1188
  %v1190 = vpop.f32.mrb[0].mxu0
  %1191 = vdwg.mxu0
  %v1192 = vmax.f32 %v1189, 0.0
  %v1193 = vld [vmem:[%s8] sm:$0xff]
  %v1194 = vld [vmem:[%s8 + $0x8] sm:$0xff]
  %v1195 = vld [vmem:[%s8 + $0x10] sm:$0xff]
  %v1196 = vld [vmem:[%s8 + $0x18] sm:$0xff]
  %v1197 = vld [vmem:[%s9] sm:$0x1]
  %v1199 = vlaneseq
  %v1200 = vshrl.u32 %v1199, 7
  %v1201 = vsub.s32 0, %v1200
  %v1202 = vrot.slane %v1197, %v1201
  %v1205 = vsel %vm200, %v1192, 0
  %1207 = vmatprep.subr.mxu0 0.0
  %1208 = vmatpush1.msra.mxu0 %v1193
  %1209 = vmatprep.subr.mxu0 0.0
  %1210 = vmatpush1.msra.mxu0 %v1194
  %1211 = vmatprep.subr.mxu0 0.0
  %1212 = vmatpush1.msra.mxu0 %v1195
  %1213 = vmatprep.subr.mxu0 0.0
  %1214 = vmatpush1.msra.mxu0 %v1196
  %1215 = vmatprep.subr.mxu0 0.0
  %1216 = vmatpush1.msra.mxu0 0.0
  %1217 = vmatprep.subr.mxu0 0.0
  %1218 = vmatpush1.msra.mxu0 0.0
  %1219 = vmatprep.subr.mxu0 0.0
  %1220 = vmatpush1.msra.mxu0 0.0
  %1221 = vmatprep.subr.mxu0 0.0
  %1222 = vmatpush1.msra.mxu0 0.0
  %1223 = vmatprep.subr.mxu0 0.0
  %1224 = vmatpush1.msra.mxu0 0.0
  %1225 = vmatprep.subr.mxu0 0.0
  %1226 = vmatpush1.msra.mxu0 0.0
  %1227 = vmatprep.subr.mxu0 0.0
  %1228 = vmatpush1.msra.mxu0 0.0
  %1229 = vmatprep.subr.mxu0 0.0
  %1230 = vmatpush1.msra.mxu0 0.0
  %1231 = vmatprep.subr.mxu0 0.0
  %1232 = vmatpush1.msra.mxu0 0.0
  %1233 = vmatprep.subr.mxu0 0.0
  %1234 = vmatpush1.msra.mxu0 0.0
  %1235 = vmatprep.subr.mxu0 0.0
  %1236 = vmatpush1.msra.mxu0 0.0
  %1237 = vmatprep.subr.mxu0 0.0
  %1238 = vmatpush1.msra.mxu0 0.0
  %1239 = vmatprep.subr.mxu0 0.0
  %1240 = vmatpush1.msra.mxu0 0.0
  %1241 = vmatprep.subr.mxu0 0.0
  %1242 = vmatpush1.msra.mxu0 0.0
  %1243 = vmatprep.subr.mxu0 0.0
  %1244 = vmatpush1.msra.mxu0 0.0
  %1245 = vmatprep.subr.mxu0 0.0
  %1246 = vmatpush1.msra.mxu0 0.0
  %1247 = vmatprep.subr.mxu0 0.0
  %1248 = vmatpush1.msra.mxu0 0.0
  %1249 = vmatprep.subr.mxu0 0.0
  %1250 = vmatpush1.msra.mxu0 0.0
  %1251 = vmatprep.subr.mxu0 0.0
  %1252 = vmatpush1.msra.mxu0 0.0
  %1253 = vmatprep.subr.mxu0 0.0
  %1254 = vmatpush1.msra.mxu0 0.0
  %1255 = vmatprep.subr.mxu0 0.0
  %1256 = vmatpush1.msra.mxu0 0.0
  %1257 = vmatprep.subr.mxu0 0.0
  %1258 = vmatpush1.msra.mxu0 0.0
  %1259 = vmatprep.subr.mxu0 0.0
  %1260 = vmatpush1.msra.mxu0 0.0
  %1261 = vmatprep.subr.mxu0 0.0
  %1262 = vmatpush1.msra.mxu0 0.0
  %1263 = vmatprep.subr.mxu0 0.0
  %1264 = vmatpush1.msra.mxu0 0.0
  %1265 = vmatprep.subr.mxu0 0.0
  %1266 = vmatpush1.msra.mxu0 0.0
  %1267 = vmatprep.subr.mxu0 0.0
  %1268 = vmatpush1.msra.mxu0 0.0
  %1269 = vmatprep.subr.mxu0 0.0
  %1270 = vmatpush1.msra.mxu0 0.0
  %1271 = vmatprep.mubr.f32.mxu0 0.0
  %1272 = vmatmul.mubr.f32.gmra.mrb[0].mxu0 %v1205
  %v1273 = vpop.f32.mrb[0].mxu0
  %v1274 = vadd.f32 %v1202, %v1273
  %v1275 = vpop.f32.mrb[0].mxu0
  %1276 = vdwg.mxu0
  %1277 = vst [vmem:[%s10] sm:$0xff] %v1274
  // Predicated region
  $region42: #{sst_net_forward.1} parent=0 // pred_check
    _
  $region43: #{sst_net_forward.1} parent=0 // pred_check_branch
    %1279 = sbr.rel (0) target = $region45
  $region44: #{sst_net_forward.1} parent=0 // pred_region
    _
  $region45: #{sst_net_forward.1} parent=0 // pred_fallthru
    _
  // Predicated region
  $region46: #{sst_net_forward.1} parent=0 // pred_check
    _
  $region47: #{sst_net_forward.1} parent=0 // pred_check_branch
    %1281 = sbr.rel (0) target = $region49
  $region48: #{sst_net_forward.1} parent=0 // pred_region
    _
  $region49: #{sst_net_forward.1} parent=0 // pred_fallthru
    _

</llo_original>
